<compile_context>
chip_gen: v6e
topology: v6e:2x2x1
jax: 0.10.0
libtpu: 0.0.40
codegen_flags: <defaults>
</compile_context>

<pallas_src>
import jax
import jax.numpy as jnp
from jax.experimental import pallas as pl
from jax.experimental.pallas import tpu as pltpu

_LANE = 128          # final layer padded to this many output columns (lane-dense)
_H1, _H2 = 512, 256  # hidden widths of the MLP
_TK = 512            # K tile for the large-D streaming path

try:  # generation-aware VMEM budget (v5e/v6e: 128 MiB, v7x: 64 MiB per core)
    _VMEM_CAP = int(pltpu.get_tpu_info().vmem_capacity_bytes)
except Exception:  # fall back to the smallest (v7x per-core) capacity
    _VMEM_CAP = 64 * 2 ** 20
_VMEM_BUDGET = int(0.75 * _VMEM_CAP)


def _round_up(x, m):
    return ((x + m - 1) // m) * m


def _leaky(h):
    return jnp.maximum(h, 0.2 * h)  # LeakyReLU(0.2): one vmul + one vmax


def _sigmoid(h):
    # exp on the EUP; reciprocal routed to the EUP via approx vrcp.
    return pl.reciprocal(1.0 + jnp.exp(-h), approx=True)


# ---------------------------------------------------------------------------
# Kernels
# ---------------------------------------------------------------------------
def _disc_kernel_resident(x_ref, w1_ref, b1_ref, w2_ref, b2_ref, w3_ref, b3_ref,
                          o_ref):
    """One batch tile; all weights VMEM-resident. f32 x cast to bf16 in-kernel."""
    x = x_ref[...].astype(jnp.bfloat16)                                      # (TM, D)

    h1 = jnp.dot(x, w1_ref[...], preferred_element_type=jnp.float32) + b1_ref[...]
    h1 = _leaky(h1)                                                          # (TM, 512)

    h2 = jnp.dot(h1.astype(jnp.bfloat16), w2_ref[...],
                 preferred_element_type=jnp.float32) + b2_ref[...]
    h2 = _leaky(h2)                                                          # (TM, 256)

    h3 = jnp.dot(h2.astype(jnp.bfloat16), w3_ref[...],
                 preferred_element_type=jnp.float32) + b3_ref[...]           # (TM, 128)

    o_ref[...] = _sigmoid(h3).astype(o_ref.dtype)


def _disc_kernel_streamk(x_ref, w1_ref, b1_ref, w2_ref, b2_ref, w3_ref, b3_ref,
                         o_ref, acc_ref):
    """Large-D variant: layer 1 accumulated over a K grid axis into f32 scratch."""
    k = pl.program_id(1)

    @pl.when(k == 0)
    def _():
        acc_ref[...] = jnp.zeros_like(acc_ref)

    acc_ref[...] += jnp.dot(x_ref[...].astype(jnp.bfloat16), w1_ref[...],
                            preferred_element_type=jnp.float32)

    @pl.when(k == pl.num_programs(1) - 1)
    def _():
        h1 = _leaky(acc_ref[...] + b1_ref[...])
        h2 = jnp.dot(h1.astype(jnp.bfloat16), w2_ref[...],
                     preferred_element_type=jnp.float32) + b2_ref[...]
        h2 = _leaky(h2)
        h3 = jnp.dot(h2.astype(jnp.bfloat16), w3_ref[...],
                     preferred_element_type=jnp.float32) + b3_ref[...]
        o_ref[...] = _sigmoid(h3).astype(o_ref.dtype)


# ---------------------------------------------------------------------------
# Parameter preparation (done ONCE, outside the per-call hot path)
# ---------------------------------------------------------------------------
def init_params(key, in_dim):
    """nn.Linear default init: U(-1/sqrt(fan_in), 1/sqrt(fan_in)).

    Weights stored as (in_features, out_features); biases as (1, out_features).
    """
    dims = [(in_dim, _H1), (_H1, _H2), (_H2, 1)]
    params = []
    for fan_in, fan_out in dims:
        key, kw, kb = jax.random.split(key, 3)
        bound = 1.0 / jnp.sqrt(jnp.float32(fan_in))
        w = jax.random.uniform(kw, (fan_in, fan_out), jnp.float32, -bound, bound)
        bvec = jax.random.uniform(kb, (1, fan_out), jnp.float32, -bound, bound)
        params.extend([w, bvec])
    return tuple(params)


def prepare_params(params):
    """Convert f32 params to kernel-ready form once (no per-call weight casts).

    Returns (w1 bf16 (D,512), b1 f32 (1,512), w2 bf16 (512,256), b2 f32 (1,256),
             w3 bf16 (256,128) lane-padded, b3 f32 (1,128) lane-padded).
    """
    w1, b1, w2, b2, w3, b3 = params
    w3_p = jnp.pad(w3, ((0, 0), (0, _LANE - w3.shape[1])))
    b3_p = jnp.pad(b3, ((0, 0), (0, _LANE - b3.shape[1])))
    return (w1.astype(jnp.bfloat16), b1.astype(jnp.float32),
            w2.astype(jnp.bfloat16), b2.astype(jnp.float32),
            w3_p.astype(jnp.bfloat16), b3_p.astype(jnp.float32))


# ---------------------------------------------------------------------------
# Tiling heuristics / VMEM estimates
# ---------------------------------------------------------------------------
def _pick_tm(b):
    if b <= 256:
        return b  # single full block: no padding, no ragged block needed
    for tm in (1024, 512):
        if b >= 2 * tm:  # keep >= 2 grid steps so v7x's 2 TCs both get work
            return tm
    return 256


def _est_resident(tm, d):
    return (2 * tm * d * 4                                  # f32 x tiles, double-buffered
            + (d * _H1 + _H1 * _H2 + _H2 * _LANE) * 2       # bf16 weights, Buffered(1)
            + (_H1 + _H2 + _LANE) * 4                       # f32 biases
            + 2 * tm * _LANE * 2                            # bf16 out tiles, double-buffered
            + tm * (2 * _H1 + _H2 + _LANE) * 4)             # f32 activations (rough)


def _est_stream(tm):
    return (2 * tm * _TK * 4 + 2 * _TK * _H1 * 2            # x / w1 tiles, double-buffered
            + (_H1 * _H2 + _H2 * _LANE) * 2                 # resident bf16 w2 / w3
            + (_H1 + _H2 + _LANE) * 4
            + tm * _H1 * 4                                  # f32 accumulator scratch
            + 2 * tm * _LANE * 2
            + tm * (_H1 + _H2 + _LANE) * 4)


# ---------------------------------------------------------------------------
# Forward
# ---------------------------------------------------------------------------
@jax.jit
def discriminator_forward(img, prepared_params):
    """img: (B, C, H, W) float32; prepared_params from prepare_params().

    Returns validity (B, 1) float32.
    """
    b = img.shape[0]
    x = img.reshape(b, -1)  # torch .view(B, -1) semantics (row-major); no copy
    d = x.shape[1]
    w1, b1, w2, b2, w3, b3 = prepared_params

    tm = _pick_tm(b)
    use_stream = (d % _TK == 0) and (_est_resident(tm, d) > _VMEM_BUDGET)
    if not use_stream:
        # TODO(synk): D not a multiple of 512 at huge D would need a masked
        # ragged-K streaming path; for now shrink TM so resident w1 still fits.
        while _est_resident(tm, d) > _VMEM_BUDGET and tm > 256:
            tm = max(256, tm // 2)

    resident = pl.Buffered(1)  # constant-index weight/bias blocks: single-buffered

    if not use_stream:
        grid = (pl.cdiv(b, tm),)
        kernel = _disc_kernel_resident
        in_specs = [
            pl.BlockSpec((tm, d), lambda i: (i, 0)),                                  # x (pipelined)
            pl.BlockSpec((d, _H1), lambda i: (0, 0), pipeline_mode=resident),         # w1
            pl.BlockSpec((1, _H1), lambda i: (0, 0), pipeline_mode=resident),         # b1
            pl.BlockSpec((_H1, _H2), lambda i: (0, 0), pipeline_mode=resident),       # w2
            pl.BlockSpec((1, _H2), lambda i: (0, 0), pipeline_mode=resident),         # b2
            pl.BlockSpec((_H2, _LANE), lambda i: (0, 0), pipeline_mode=resident),     # w3
            pl.BlockSpec((1, _LANE), lambda i: (0, 0), pipeline_mode=resident),       # b3
        ]
        out_spec = pl.BlockSpec((tm, _LANE), lambda i: (i, 0))
        scratch = []
        dims = ("parallel",)
        est = _est_resident(tm, d)
    else:
        grid = (pl.cdiv(b, tm), d // _TK)  # K last + "arbitrary" (accumulator axis)
        kernel = _disc_kernel_streamk
        in_specs = [
            pl.BlockSpec((tm, _TK), lambda i, k: (i, k)),                             # x tile
            pl.BlockSpec((_TK, _H1), lambda i, k: (k, 0)),                            # w1 K-slab
            pl.BlockSpec((1, _H1), lambda i, k: (0, 0), pipeline_mode=resident),      # b1
            pl.BlockSpec((_H1, _H2), lambda i, k: (0, 0), pipeline_mode=resident),    # w2
            pl.BlockSpec((1, _H2), lambda i, k: (0, 0), pipeline_mode=resident),      # b2
            pl.BlockSpec((_H2, _LANE), lambda i, k: (0, 0), pipeline_mode=resident),  # w3
            pl.BlockSpec((1, _LANE), lambda i, k: (0, 0), pipeline_mode=resident),    # b3
        ]
        out_spec = pl.BlockSpec((tm, _LANE), lambda i, k: (i, 0))
        scratch = [pltpu.VMEM((tm, _H1), jnp.float32)]
        dims = ("parallel", "arbitrary")
        est = _est_stream(tm)

    vmem_limit = min(_VMEM_BUDGET, max(int(est * 1.3), 32 * 2 ** 20))

    out = pl.pallas_call(
        kernel,
        out_shape=jax.ShapeDtypeStruct((b, _LANE), jnp.bfloat16),
        grid=grid,
        in_specs=in_specs,
        out_specs=out_spec,
        scratch_shapes=scratch,
        compiler_params=pltpu.CompilerParams(
            dimension_semantics=dims, vmem_limit_bytes=vmem_limit),
    )(x, w1, b1, w2, b2, w3, b3)

    # Only column 0 of the lane-dense tile is real; cast back to f32 for callers.
    return out[:, :1].astype(jnp.float32)


# ---------------------------------------------------------------------------
# Pure-JAX references
# ---------------------------------------------------------------------------
def _reference_forward_f32(img, params):
    """f32 reference matching the PyTorch module semantics."""
    b = img.shape[0]
    x = img.reshape(b, -1)
    w1, b1, w2, b2, w3, b3 = params
    h = x @ w1 + b1
    h = jnp.where(h > 0, h, 0.2 * h)
    h = h @ w2 + b2
    h = jnp.where(h > 0, h, 0.2 * h)
    h = h @ w3 + b3
    return jax.nn.sigmoid(h)


def _reference_forward_bf16(img, params):
    """Reference mirroring the kernel's bf16-operand / f32-accumulate math."""
    b = img.shape[0]
    x = img.reshape(b, -1).astype(jnp.bfloat16)
    w1, b1, w2, b2, w3, b3 = params
    h = jnp.dot(x, w1.astype(jnp.bfloat16), preferred_element_type=jnp.float32) + b1
    h = jnp.maximum(h, 0.2 * h)
    h = jnp.dot(h.astype(jnp.bfloat16), w2.astype(jnp.bfloat16),
                preferred_element_type=jnp.float32) + b2
    h = jnp.maximum(h, 0.2 * h)
    h = jnp.dot(h.astype(jnp.bfloat16), w3.astype(jnp.bfloat16),
                preferred_element_type=jnp.float32) + b3
    return jax.nn.sigmoid(h).astype(jnp.bfloat16).astype(jnp.float32)


if __name__ == "__main__":
    # Small shapes consistent with the module: opt.channels=4, opt.img_size=16
    B, C, H, W = 2, 4, 16, 16
    in_dim = C * H * W  # 1024

    key = jax.random.PRNGKey(0)
    k_img, k_params = jax.random.split(key)
    img = jax.random.normal(k_img, (B, C, H, W), jnp.float32)

    params = init_params(k_params, in_dim)      # f32 "PyTorch" parameters
    prepared = prepare_params(params)           # one-time kernel-ready conversion

    out = discriminator_forward(img, prepared)
    out = jax.block_until_ready(out)
    assert out.shape == (B, 1), out.shape
    assert bool(jnp.all(jnp.isfinite(out))), out

    # Tight check vs a reference using the same bf16-operand / bf16-output math.
    ref_bf16 = _reference_forward_bf16(img, params)
    assert jnp.allclose(out, ref_bf16, atol=1e-2, rtol=0), (out, ref_bf16)
    # Sanity check vs the full-f32 PyTorch-equivalent reference.
    ref_f32 = _reference_forward_f32(img, params)
    assert jnp.allclose(out, ref_f32, atol=3e-2, rtol=0), (out, ref_f32)

    print("KERNEL_OK")
</pallas_src>

<mosaic_0001>
module attributes {stable_mosaic.version = 11 : i64} {
  func.func @_disc_kernel_resident(%arg0: i32, %arg1: memref<2x1024xf32, #tpu.memory_space<vmem>>, %arg2: memref<1024x512xbf16, #tpu.memory_space<vmem>>, %arg3: memref<1x512xf32, #tpu.memory_space<vmem>>, %arg4: memref<512x256xbf16, #tpu.memory_space<vmem>>, %arg5: memref<1x256xf32, #tpu.memory_space<vmem>>, %arg6: memref<256x128xbf16, #tpu.memory_space<vmem>>, %arg7: memref<1x128xf32, #tpu.memory_space<vmem>>, %arg8: memref<2x128xbf16, #tpu.memory_space<vmem>>) attributes {dimension_semantics = [#tpu.dimension_semantics<parallel>], iteration_bounds = array<i64: 1>, scalar_prefetch = 0 : i64, scratch_operands = 0 : i64, tpu.core_type = #tpu.core_type<tc>, window_params = [{transform_indices = @transform_0, window_bounds = array<i64: 2, 1024>}, {pipeline_mode = #tpu.pipeline_mode<synchronous>, transform_indices = @transform_1, window_bounds = array<i64: 1024, 512>}, {pipeline_mode = #tpu.pipeline_mode<synchronous>, transform_indices = @transform_2, window_bounds = array<i64: 1, 512>}, {pipeline_mode = #tpu.pipeline_mode<synchronous>, transform_indices = @transform_3, window_bounds = array<i64: 512, 256>}, {pipeline_mode = #tpu.pipeline_mode<synchronous>, transform_indices = @transform_4, window_bounds = array<i64: 1, 256>}, {pipeline_mode = #tpu.pipeline_mode<synchronous>, transform_indices = @transform_5, window_bounds = array<i64: 256, 128>}, {pipeline_mode = #tpu.pipeline_mode<synchronous>, transform_indices = @transform_6, window_bounds = array<i64: 1, 128>}, {transform_indices = @transform_7, window_bounds = array<i64: 2, 128>}]} {
    %c0 = arith.constant 0 : index
    %c0_0 = arith.constant 0 : index
    %0 = vector.load %arg1[%c0, %c0_0] : memref<2x1024xf32, #tpu.memory_space<vmem>>, vector<2x1024xf32>
    %1 = arith.truncf %0 : vector<2x1024xf32> to vector<2x1024xbf16>
    %c0_1 = arith.constant 0 : index
    %c0_2 = arith.constant 0 : index
    %2 = vector.load %arg2[%c0_1, %c0_2] : memref<1024x512xbf16, #tpu.memory_space<vmem>>, vector<1024x512xbf16>
    %cst = arith.constant dense<0.000000e+00> : vector<2x512xf32>
    %3 = tpu.matmul %1, %2, %cst {dimension_numbers = #tpu.dot_dimension_numbers<[1], [0], [0], [1], [0, 0, 1, 1], [], []>} : vector<2x1024xbf16>, vector<1024x512xbf16>, vector<2x512xf32> -> vector<2x512xf32>
    %c0_3 = arith.constant 0 : index
    %c0_4 = arith.constant 0 : index
    %4 = vector.load %arg3[%c0_3, %c0_4] : memref<1x512xf32, #tpu.memory_space<vmem>>, vector<1x512xf32>
    %5 = vector.broadcast %4 : vector<1x512xf32> to vector<2x512xf32>
    %6 = arith.addf %3, %5 : vector<2x512xf32>
    %cst_5 = arith.constant 2.000000e-01 : f32
    %7 = vector.broadcast %cst_5 : f32 to vector<2x512xf32>
    %8 = arith.mulf %7, %6 : vector<2x512xf32>
    %9 = arith.maximumf %6, %8 : vector<2x512xf32>
    %10 = arith.truncf %9 : vector<2x512xf32> to vector<2x512xbf16>
    %c0_6 = arith.constant 0 : index
    %c0_7 = arith.constant 0 : index
    %11 = vector.load %arg4[%c0_6, %c0_7] : memref<512x256xbf16, #tpu.memory_space<vmem>>, vector<512x256xbf16>
    %cst_8 = arith.constant dense<0.000000e+00> : vector<2x256xf32>
    %12 = tpu.matmul %10, %11, %cst_8 {dimension_numbers = #tpu.dot_dimension_numbers<[1], [0], [0], [1], [0, 0, 1, 1], [], []>} : vector<2x512xbf16>, vector<512x256xbf16>, vector<2x256xf32> -> vector<2x256xf32>
    %c0_9 = arith.constant 0 : index
    %c0_10 = arith.constant 0 : index
    %13 = vector.load %arg5[%c0_9, %c0_10] : memref<1x256xf32, #tpu.memory_space<vmem>>, vector<1x256xf32>
    %14 = vector.broadcast %13 : vector<1x256xf32> to vector<2x256xf32>
    %15 = arith.addf %12, %14 : vector<2x256xf32>
    %cst_11 = arith.constant 2.000000e-01 : f32
    %16 = vector.broadcast %cst_11 : f32 to vector<2x256xf32>
    %17 = arith.mulf %16, %15 : vector<2x256xf32>
    %18 = arith.maximumf %15, %17 : vector<2x256xf32>
    %19 = arith.truncf %18 : vector<2x256xf32> to vector<2x256xbf16>
    %c0_12 = arith.constant 0 : index
    %c0_13 = arith.constant 0 : index
    %20 = vector.load %arg6[%c0_12, %c0_13] : memref<256x128xbf16, #tpu.memory_space<vmem>>, vector<256x128xbf16>
    %cst_14 = arith.constant dense<0.000000e+00> : vector<2x128xf32>
    %21 = tpu.matmul %19, %20, %cst_14 {dimension_numbers = #tpu.dot_dimension_numbers<[1], [0], [0], [1], [0, 0, 1, 1], [], []>} : vector<2x256xbf16>, vector<256x128xbf16>, vector<2x128xf32> -> vector<2x128xf32>
    %c0_15 = arith.constant 0 : index
    %c0_16 = arith.constant 0 : index
    %22 = vector.load %arg7[%c0_15, %c0_16] : memref<1x128xf32, #tpu.memory_space<vmem>>, vector<1x128xf32>
    %23 = vector.broadcast %22 : vector<1x128xf32> to vector<2x128xf32>
    %24 = arith.addf %21, %23 : vector<2x128xf32>
    %cst_17 = arith.constant 0.000000e+00 : f32
    %25 = vector.broadcast %cst_17 : f32 to vector<2x128xf32>
    %26 = arith.subf %25, %24 : vector<2x128xf32>
    %27 = math.exp %26 : vector<2x128xf32>
    %cst_18 = arith.constant 1.000000e+00 : f32
    %28 = vector.broadcast %cst_18 : f32 to vector<2x128xf32>
    %29 = arith.addf %28, %27 : vector<2x128xf32>
    %30 = tpu.reciprocal %29 {approx = true} : vector<2x128xf32> -> vector<2x128xf32>
    %31 = arith.truncf %30 : vector<2x128xf32> to vector<2x128xbf16>
    %c0_19 = arith.constant 0 : index
    %c0_20 = arith.constant 0 : index
    %32 = vector.load %arg8[%c0_19, %c0_20] : memref<2x128xbf16, #tpu.memory_space<vmem>>, vector<2x128xbf16>
    tpu.vector_store %arg8[%c0_19, %c0_20], %31 {strides = array<i32>} : memref<2x128xbf16, #tpu.memory_space<vmem>>, vector<2x128xbf16>,
    return
  }
  func.func @transform_0(%arg0: i32) -> (i32, i32) {
    %c0_i32 = arith.constant 0 : i32
    %c0_i32_0 = arith.constant 0 : i32
    return %arg0, %c0_i32 : i32, i32
  }
  func.func @transform_1(%arg0: i32) -> (i32, i32) {
    %c0_i32 = arith.constant 0 : i32
    %c0_i32_0 = arith.constant 0 : i32
    %c0_i32_1 = arith.constant 0 : i32
    return %c0_i32, %c0_i32_0 : i32, i32
  }
  func.func @transform_2(%arg0: i32) -> (i32, i32) {
    %c0_i32 = arith.constant 0 : i32
    %c0_i32_0 = arith.constant 0 : i32
    %c0_i32_1 = arith.constant 0 : i32
    return %c0_i32, %c0_i32_0 : i32, i32
  }
  func.func @transform_3(%arg0: i32) -> (i32, i32) {
    %c0_i32 = arith.constant 0 : i32
    %c0_i32_0 = arith.constant 0 : i32
    %c0_i32_1 = arith.constant 0 : i32
    return %c0_i32, %c0_i32_0 : i32, i32
  }
  func.func @transform_4(%arg0: i32) -> (i32, i32) {
    %c0_i32 = arith.constant 0 : i32
    %c0_i32_0 = arith.constant 0 : i32
    %c0_i32_1 = arith.constant 0 : i32
    return %c0_i32, %c0_i32_0 : i32, i32
  }
  func.func @transform_5(%arg0: i32) -> (i32, i32) {
    %c0_i32 = arith.constant 0 : i32
    %c0_i32_0 = arith.constant 0 : i32
    %c0_i32_1 = arith.constant 0 : i32
    return %c0_i32, %c0_i32_0 : i32, i32
  }
  func.func @transform_6(%arg0: i32) -> (i32, i32) {
    %c0_i32 = arith.constant 0 : i32
    %c0_i32_0 = arith.constant 0 : i32
    %c0_i32_1 = arith.constant 0 : i32
    return %c0_i32, %c0_i32_0 : i32, i32
  }
  func.func @transform_7(%arg0: i32) -> (i32, i32) {
    %c0_i32 = arith.constant 0 : i32
    %c0_i32_0 = arith.constant 0 : i32
    return %arg0, %c0_i32 : i32, i32
  }
}

</mosaic_0001>

<llo_original>
// kernel: discriminator_forward.1
$region0: #{discriminator_forward.1}
  #allocation0 [shape = 'u32[]', space=smem, size = 0x4, offset = 0x4, fixed_abs, tag = 'smem constant byte address 0x4 - core index']
  #allocation1 [shape = 'u32[144,128]{1,0:T(1,128)}', space=vmem, size = 0x12000, scoped, tag = 'internal scratch']
  %s0 = inlined_call_operand.vmem [shape: f32[2,1024], index: 0, kind: input, shape index: {}]
  %s1 = inlined_call_operand.hbm [shape: bf16[1024,512], index: 1, kind: input, shape index: {}]
  %s2 = inlined_call_operand.vmem [shape: f32[1,512], index: 2, kind: input, shape index: {}]
  %s3 = inlined_call_operand.hbm [shape: bf16[512,256], index: 3, kind: input, shape index: {}]
  %s4 = inlined_call_operand.vmem [shape: f32[1,256], index: 4, kind: input, shape index: {}]
  %s5 = inlined_call_operand.vmem [shape: bf16[256,128], index: 5, kind: input, shape index: {}]
  %s6 = inlined_call_operand.vmem [shape: f32[1,128], index: 6, kind: input, shape index: {}]
  %s7 = inlined_call_operand.vmem [shape: bf16[2,128], index: 7, kind: output, shape index: {}]
  %s8 = sld [smem:[#allocation0]]
  $region46: #{discriminator_forward.1} parent=0
    _
  %s10 = ssub.s32 1, %s8
  %s11 = scalar_select 0, %s10, %s8
  $region1: #{discriminator_forward.1} parent=0
    #allocation2 [shape = 'u8[1048576]{0}', space=vmem, size = 0x100000, scoped, tag = 'input window, operand 1, single buffered']
    #allocation3 [shape = 's32[1]{0}', space=sflag, size = 0x4, scoped, tag = 'scoped memory for discriminator_forward.1']
    #allocation4 [shape = 'u8[262144]{0}', space=vmem, size = 0x40000, scoped, tag = 'input window, operand 3, single buffered']
    #allocation5 [shape = 's32[1]{0}', space=sflag, size = 0x4, scoped, tag = 'scoped memory for discriminator_forward.1']
    %12 = vsyncpa [#allocation3], 0
    %13 = vsyncpa [#allocation5], 0
    // Predicated region
    $region2: #{discriminator_forward.1} parent=1 // pred_check
      _
    $region3: #{discriminator_forward.1} parent=1 // pred_check_branch
      %15 = sbr.rel (0) target = $region5
    $region4: #{discriminator_forward.1} parent=1 // pred_region
      _
    $region5: #{discriminator_forward.1} parent=1 // pred_fallthru
      _
    // Predicated region
    $region6: #{discriminator_forward.1} parent=1 // pred_check
      _
    $region7: #{discriminator_forward.1} parent=1 // pred_check_branch
      %17 = sbr.rel (0) target = $region9
    $region8: #{discriminator_forward.1} parent=1 // pred_region
      %s19 = ssub.s32 32768, 32768
      %20 = vsyncadd [#allocation3], %s19
      %s21 = sshll.u32 [#allocation2], 4
      %s22 = int_to_ptr.vmem [resolvable:$true] %s21
      %27 = dma.hbm_to_vmem [thread:$0]  %s1, 32768, %s22, [#allocation3], 256, 256, 16
    $region9: #{discriminator_forward.1} parent=1 // pred_fallthru
      _
    // Predicated region
    $region10: #{discriminator_forward.1} parent=1 // pred_check
      _
    $region11: #{discriminator_forward.1} parent=1 // pred_check_branch
      %29 = sbr.rel (0) target = $region13
    $region12: #{discriminator_forward.1} parent=1 // pred_region
      _
    $region13: #{discriminator_forward.1} parent=1 // pred_fallthru
      _
    // Predicated region
    $region14: #{discriminator_forward.1} parent=1 // pred_check
      _
    $region15: #{discriminator_forward.1} parent=1 // pred_check_branch
      %31 = sbr.rel (0) target = $region17
    $region16: #{discriminator_forward.1} parent=1 // pred_region
      %s33 = ssub.s32 8192, 8192
      %34 = vsyncadd [#allocation5], %s33
      %s35 = sshll.u32 [#allocation4], 4
      %s36 = int_to_ptr.vmem [resolvable:$true] %s35
      %41 = dma.hbm_to_vmem [thread:$0]  %s3, 8192, %s36, [#allocation5], 128, 128, 8
    $region17: #{discriminator_forward.1} parent=1 // pred_fallthru
      _
    // Predicated region
    $region18: #{discriminator_forward.1} parent=1 // pred_check
      _
    $region19: #{discriminator_forward.1} parent=1 // pred_check_branch
      %43 = sbr.rel (0) target = $region21
    $region20: #{discriminator_forward.1} parent=1 // pred_region
      _
    $region21: #{discriminator_forward.1} parent=1 // pred_fallthru
      _
    // Predicated region
    $region22: #{discriminator_forward.1} parent=1 // pred_check
      _
    $region23: #{discriminator_forward.1} parent=1 // pred_check_branch
      %45 = sbr.rel (0) target = $region25
    $region24: #{discriminator_forward.1} parent=1 // pred_region
      _
    $region25: #{discriminator_forward.1} parent=1 // pred_fallthru
      _
    // Predicated region
    $region26: #{discriminator_forward.1} parent=1 // pred_check
      _
    $region27: #{discriminator_forward.1} parent=1 // pred_check_branch
      %47 = sbr.rel (0) target = $region29
    $region28: #{discriminator_forward.1} parent=1 // pred_region
      _
    $region29: #{discriminator_forward.1} parent=1 // pred_fallthru
      _
    // Predicated region
    $region30: #{discriminator_forward.1} parent=1 // pred_check
      _
    $region31: #{discriminator_forward.1} parent=1 // pred_check_branch
      %49 = sbr.rel (0) target = $region33
    $region32: #{discriminator_forward.1} parent=1 // pred_region
      %50 = dma.done [#allocation3], 32768
    $region33: #{discriminator_forward.1} parent=1 // pred_fallthru
      _
    // Predicated region
    $region34: #{discriminator_forward.1} parent=1 // pred_check
      _
    $region35: #{discriminator_forward.1} parent=1 // pred_check_branch
      %52 = sbr.rel (0) target = $region37
    $region36: #{discriminator_forward.1} parent=1 // pred_region
      %53 = dma.done [#allocation5], 8192
    $region37: #{discriminator_forward.1} parent=1 // pred_fallthru
      _
    %v55 = vld [vmem:[%s0] sm:$0xff]
    %v56 = vld [vmem:[%s0 + $0x8] sm:$0xff]
    %v59 = vcombine.high %v55, %v55
    %v61 = vunpack.c.l.s4 1983009808
    %v62 = vunpack.c.0.s8 %v61
    %v63 = vlaneseq
    %v64 = vshrl.u32 %v63, 7
    %v65 = vsub.s32 %v62, %v64
    %v66 = vrot.slane %v55, %v65
    %v68 = vunpack.c.l.s4 1983009808
    %v69 = vunpack.c.0.s8 %v68
    %v70 = vlaneseq
    %v71 = vshrl.u32 %v70, 7
    %v72 = vsub.s32 %v69, %v71
    %v73 = vrot.slane %v59, %v72
    %v74 = vcombine.high %v66, %v66
    %v75 = vcombine.high %v73, %v73
    %v76 = vcombine.high %v56, %v56
    %v78 = vunpack.c.l.s4 1983009808
    %v79 = vunpack.c.0.s8 %v78
    %v80 = vlaneseq
    %v81 = vshrl.u32 %v80, 7
    %v82 = vsub.s32 %v79, %v81
    %v83 = vrot.slane %v56, %v82
    %v85 = vunpack.c.l.s4 1983009808
    %v86 = vunpack.c.0.s8 %v85
    %v87 = vlaneseq
    %v88 = vshrl.u32 %v87, 7
    %v89 = vsub.s32 %v86, %v88
    %v90 = vrot.slane %v76, %v89
    %v91 = vcombine.high %v83, %v83
    %v92 = vcombine.high %v90, %v90
    %v101 = vpack.c.bf16 %v66, %v66
    %v102 = vpack.c.bf16 %v74, %v74
    %v103 = vpack.c.bf16 %v73, %v73
    %v104 = vpack.c.bf16 %v75, %v75
    %v105 = vpack.c.bf16 %v83, %v83
    %v106 = vpack.c.bf16 %v91, %v91
    %v107 = vpack.c.bf16 %v90, %v90
    %v108 = vpack.c.bf16 %v92, %v92
    %v109 = vld [vmem:[#allocation2] sm:$0xff]
    %v110 = vld [vmem:[#allocation2 + $0x8] sm:$0xff]
    %v111 = vld [vmem:[#allocation2 + $0x10] sm:$0xff]
    %v112 = vld [vmem:[#allocation2 + $0x18] sm:$0xff]
    %v113 = vld [vmem:[#allocation2 + $0x20] sm:$0xff]
    %v114 = vld [vmem:[#allocation2 + $0x28] sm:$0xff]
    %v115 = vld [vmem:[#allocation2 + $0x30] sm:$0xff]
    %v116 = vld [vmem:[#allocation2 + $0x38] sm:$0xff]
    %v117 = vld [vmem:[#allocation2 + $0x40] sm:$0xff]
    %v118 = vld [vmem:[#allocation2 + $0x48] sm:$0xff]
    %v119 = vld [vmem:[#allocation2 + $0x50] sm:$0xff]
    %v120 = vld [vmem:[#allocation2 + $0x58] sm:$0xff]
    %v121 = vld [vmem:[#allocation2 + $0x60] sm:$0xff]
    %v122 = vld [vmem:[#allocation2 + $0x68] sm:$0xff]
    %v123 = vld [vmem:[#allocation2 + $0x70] sm:$0xff]
    %v124 = vld [vmem:[#allocation2 + $0x78] sm:$0xff]
    %v125 = vld [vmem:[#allocation2 + $0x80] sm:$0xff]
    %v126 = vld [vmem:[#allocation2 + $0x88] sm:$0xff]
    %v127 = vld [vmem:[#allocation2 + $0x90] sm:$0xff]
    %v128 = vld [vmem:[#allocation2 + $0x98] sm:$0xff]
    %v129 = vld [vmem:[#allocation2 + $0xa0] sm:$0xff]
    %v130 = vld [vmem:[#allocation2 + $0xa8] sm:$0xff]
    %v131 = vld [vmem:[#allocation2 + $0xb0] sm:$0xff]
    %v132 = vld [vmem:[#allocation2 + $0xb8] sm:$0xff]
    %v133 = vld [vmem:[#allocation2 + $0xc0] sm:$0xff]
    %v134 = vld [vmem:[#allocation2 + $0xc8] sm:$0xff]
    %v135 = vld [vmem:[#allocation2 + $0xd0] sm:$0xff]
    %v136 = vld [vmem:[#allocation2 + $0xd8] sm:$0xff]
    %v137 = vld [vmem:[#allocation2 + $0xe0] sm:$0xff]
    %v138 = vld [vmem:[#allocation2 + $0xe8] sm:$0xff]
    %v139 = vld [vmem:[#allocation2 + $0xf0] sm:$0xff]
    %v140 = vld [vmem:[#allocation2 + $0xf8] sm:$0xff]
    %v141 = vld [vmem:[#allocation2 + $0x100] sm:$0xff]
    %v142 = vld [vmem:[#allocation2 + $0x108] sm:$0xff]
    %v143 = vld [vmem:[#allocation2 + $0x110] sm:$0xff]
    %v144 = vld [vmem:[#allocation2 + $0x118] sm:$0xff]
    %v145 = vld [vmem:[#allocation2 + $0x120] sm:$0xff]
    %v146 = vld [vmem:[#allocation2 + $0x128] sm:$0xff]
    %v147 = vld [vmem:[#allocation2 + $0x130] sm:$0xff]
    %v148 = vld [vmem:[#allocation2 + $0x138] sm:$0xff]
    %v149 = vld [vmem:[#allocation2 + $0x140] sm:$0xff]
    %v150 = vld [vmem:[#allocation2 + $0x148] sm:$0xff]
    %v151 = vld [vmem:[#allocation2 + $0x150] sm:$0xff]
    %v152 = vld [vmem:[#allocation2 + $0x158] sm:$0xff]
    %v153 = vld [vmem:[#allocation2 + $0x160] sm:$0xff]
    %v154 = vld [vmem:[#allocation2 + $0x168] sm:$0xff]
    %v155 = vld [vmem:[#allocation2 + $0x170] sm:$0xff]
    %v156 = vld [vmem:[#allocation2 + $0x178] sm:$0xff]
    %v157 = vld [vmem:[#allocation2 + $0x180] sm:$0xff]
    %v158 = vld [vmem:[#allocation2 + $0x188] sm:$0xff]
    %v159 = vld [vmem:[#allocation2 + $0x190] sm:$0xff]
    %v160 = vld [vmem:[#allocation2 + $0x198] sm:$0xff]
    %v161 = vld [vmem:[#allocation2 + $0x1a0] sm:$0xff]
    %v162 = vld [vmem:[#allocation2 + $0x1a8] sm:$0xff]
    %v163 = vld [vmem:[#allocation2 + $0x1b0] sm:$0xff]
    %v164 = vld [vmem:[#allocation2 + $0x1b8] sm:$0xff]
    %v165 = vld [vmem:[#allocation2 + $0x1c0] sm:$0xff]
    %v166 = vld [vmem:[#allocation2 + $0x1c8] sm:$0xff]
    %v167 = vld [vmem:[#allocation2 + $0x1d0] sm:$0xff]
    %v168 = vld [vmem:[#allocation2 + $0x1d8] sm:$0xff]
    %v169 = vld [vmem:[#allocation2 + $0x1e0] sm:$0xff]
    %v170 = vld [vmem:[#allocation2 + $0x1e8] sm:$0xff]
    %v171 = vld [vmem:[#allocation2 + $0x1f0] sm:$0xff]
    %v172 = vld [vmem:[#allocation2 + $0x1f8] sm:$0xff]
    %v173 = vld [vmem:[#allocation2 + $0x200] sm:$0xff]
    %v174 = vld [vmem:[#allocation2 + $0x208] sm:$0xff]
    %v175 = vld [vmem:[#allocation2 + $0x210] sm:$0xff]
    %v176 = vld [vmem:[#allocation2 + $0x218] sm:$0xff]
    %v177 = vld [vmem:[#allocation2 + $0x220] sm:$0xff]
    %v178 = vld [vmem:[#allocation2 + $0x228] sm:$0xff]
    %v179 = vld [vmem:[#allocation2 + $0x230] sm:$0xff]
    %v180 = vld [vmem:[#allocation2 + $0x238] sm:$0xff]
    %v181 = vld [vmem:[#allocation2 + $0x240] sm:$0xff]
    %v182 = vld [vmem:[#allocation2 + $0x248] sm:$0xff]
    %v183 = vld [vmem:[#allocation2 + $0x250] sm:$0xff]
    %v184 = vld [vmem:[#allocation2 + $0x258] sm:$0xff]
    %v185 = vld [vmem:[#allocation2 + $0x260] sm:$0xff]
    %v186 = vld [vmem:[#allocation2 + $0x268] sm:$0xff]
    %v187 = vld [vmem:[#allocation2 + $0x270] sm:$0xff]
    %v188 = vld [vmem:[#allocation2 + $0x278] sm:$0xff]
    %v189 = vld [vmem:[#allocation2 + $0x280] sm:$0xff]
    %v190 = vld [vmem:[#allocation2 + $0x288] sm:$0xff]
    %v191 = vld [vmem:[#allocation2 + $0x290] sm:$0xff]
    %v192 = vld [vmem:[#allocation2 + $0x298] sm:$0xff]
    %v193 = vld [vmem:[#allocation2 + $0x2a0] sm:$0xff]
    %v194 = vld [vmem:[#allocation2 + $0x2a8] sm:$0xff]
    %v195 = vld [vmem:[#allocation2 + $0x2b0] sm:$0xff]
    %v196 = vld [vmem:[#allocation2 + $0x2b8] sm:$0xff]
    %v197 = vld [vmem:[#allocation2 + $0x2c0] sm:$0xff]
    %v198 = vld [vmem:[#allocation2 + $0x2c8] sm:$0xff]
    %v199 = vld [vmem:[#allocation2 + $0x2d0] sm:$0xff]
    %v200 = vld [vmem:[#allocation2 + $0x2d8] sm:$0xff]
    %v201 = vld [vmem:[#allocation2 + $0x2e0] sm:$0xff]
    %v202 = vld [vmem:[#allocation2 + $0x2e8] sm:$0xff]
    %v203 = vld [vmem:[#allocation2 + $0x2f0] sm:$0xff]
    %v204 = vld [vmem:[#allocation2 + $0x2f8] sm:$0xff]
    %v205 = vld [vmem:[#allocation2 + $0x300] sm:$0xff]
    %v206 = vld [vmem:[#allocation2 + $0x308] sm:$0xff]
    %v207 = vld [vmem:[#allocation2 + $0x310] sm:$0xff]
    %v208 = vld [vmem:[#allocation2 + $0x318] sm:$0xff]
    %v209 = vld [vmem:[#allocation2 + $0x320] sm:$0xff]
    %v210 = vld [vmem:[#allocation2 + $0x328] sm:$0xff]
    %v211 = vld [vmem:[#allocation2 + $0x330] sm:$0xff]
    %v212 = vld [vmem:[#allocation2 + $0x338] sm:$0xff]
    %v213 = vld [vmem:[#allocation2 + $0x340] sm:$0xff]
    %v214 = vld [vmem:[#allocation2 + $0x348] sm:$0xff]
    %v215 = vld [vmem:[#allocation2 + $0x350] sm:$0xff]
    %v216 = vld [vmem:[#allocation2 + $0x358] sm:$0xff]
    %v217 = vld [vmem:[#allocation2 + $0x360] sm:$0xff]
    %v218 = vld [vmem:[#allocation2 + $0x368] sm:$0xff]
    %v219 = vld [vmem:[#allocation2 + $0x370] sm:$0xff]
    %v220 = vld [vmem:[#allocation2 + $0x378] sm:$0xff]
    %v221 = vld [vmem:[#allocation2 + $0x380] sm:$0xff]
    %v222 = vld [vmem:[#allocation2 + $0x388] sm:$0xff]
    %v223 = vld [vmem:[#allocation2 + $0x390] sm:$0xff]
    %v224 = vld [vmem:[#allocation2 + $0x398] sm:$0xff]
    %v225 = vld [vmem:[#allocation2 + $0x3a0] sm:$0xff]
    %v226 = vld [vmem:[#allocation2 + $0x3a8] sm:$0xff]
    %v227 = vld [vmem:[#allocation2 + $0x3b0] sm:$0xff]
    %v228 = vld [vmem:[#allocation2 + $0x3b8] sm:$0xff]
    %v229 = vld [vmem:[#allocation2 + $0x3c0] sm:$0xff]
    %v230 = vld [vmem:[#allocation2 + $0x3c8] sm:$0xff]
    %v231 = vld [vmem:[#allocation2 + $0x3d0] sm:$0xff]
    %v232 = vld [vmem:[#allocation2 + $0x3d8] sm:$0xff]
    %v233 = vld [vmem:[#allocation2 + $0x3e0] sm:$0xff]
    %v234 = vld [vmem:[#allocation2 + $0x3e8] sm:$0xff]
    %v235 = vld [vmem:[#allocation2 + $0x3f0] sm:$0xff]
    %v236 = vld [vmem:[#allocation2 + $0x3f8] sm:$0xff]
    %v237 = vld [vmem:[#allocation2 + $0x400] sm:$0xff]
    %v238 = vld [vmem:[#allocation2 + $0x408] sm:$0xff]
    %v239 = vld [vmem:[#allocation2 + $0x410] sm:$0xff]
    %v240 = vld [vmem:[#allocation2 + $0x418] sm:$0xff]
    %v241 = vld [vmem:[#allocation2 + $0x420] sm:$0xff]
    %v242 = vld [vmem:[#allocation2 + $0x428] sm:$0xff]
    %v243 = vld [vmem:[#allocation2 + $0x430] sm:$0xff]
    %v244 = vld [vmem:[#allocation2 + $0x438] sm:$0xff]
    %v245 = vld [vmem:[#allocation2 + $0x440] sm:$0xff]
    %v246 = vld [vmem:[#allocation2 + $0x448] sm:$0xff]
    %v247 = vld [vmem:[#allocation2 + $0x450] sm:$0xff]
    %v248 = vld [vmem:[#allocation2 + $0x458] sm:$0xff]
    %v249 = vld [vmem:[#allocation2 + $0x460] sm:$0xff]
    %v250 = vld [vmem:[#allocation2 + $0x468] sm:$0xff]
    %v251 = vld [vmem:[#allocation2 + $0x470] sm:$0xff]
    %v252 = vld [vmem:[#allocation2 + $0x478] sm:$0xff]
    %v253 = vld [vmem:[#allocation2 + $0x480] sm:$0xff]
    %v254 = vld [vmem:[#allocation2 + $0x488] sm:$0xff]
    %v255 = vld [vmem:[#allocation2 + $0x490] sm:$0xff]
    %v256 = vld [vmem:[#allocation2 + $0x498] sm:$0xff]
    %v257 = vld [vmem:[#allocation2 + $0x4a0] sm:$0xff]
    %v258 = vld [vmem:[#allocation2 + $0x4a8] sm:$0xff]
    %v259 = vld [vmem:[#allocation2 + $0x4b0] sm:$0xff]
    %v260 = vld [vmem:[#allocation2 + $0x4b8] sm:$0xff]
    %v261 = vld [vmem:[#allocation2 + $0x4c0] sm:$0xff]
    %v262 = vld [vmem:[#allocation2 + $0x4c8] sm:$0xff]
    %v263 = vld [vmem:[#allocation2 + $0x4d0] sm:$0xff]
    %v264 = vld [vmem:[#allocation2 + $0x4d8] sm:$0xff]
    %v265 = vld [vmem:[#allocation2 + $0x4e0] sm:$0xff]
    %v266 = vld [vmem:[#allocation2 + $0x4e8] sm:$0xff]
    %v267 = vld [vmem:[#allocation2 + $0x4f0] sm:$0xff]
    %v268 = vld [vmem:[#allocation2 + $0x4f8] sm:$0xff]
    %v269 = vld [vmem:[#allocation2 + $0x500] sm:$0xff]
    %v270 = vld [vmem:[#allocation2 + $0x508] sm:$0xff]
    %v271 = vld [vmem:[#allocation2 + $0x510] sm:$0xff]
    %v272 = vld [vmem:[#allocation2 + $0x518] sm:$0xff]
    %v273 = vld [vmem:[#allocation2 + $0x520] sm:$0xff]
    %v274 = vld [vmem:[#allocation2 + $0x528] sm:$0xff]
    %v275 = vld [vmem:[#allocation2 + $0x530] sm:$0xff]
    %v276 = vld [vmem:[#allocation2 + $0x538] sm:$0xff]
    %v277 = vld [vmem:[#allocation2 + $0x540] sm:$0xff]
    %v278 = vld [vmem:[#allocation2 + $0x548] sm:$0xff]
    %v279 = vld [vmem:[#allocation2 + $0x550] sm:$0xff]
    %v280 = vld [vmem:[#allocation2 + $0x558] sm:$0xff]
    %v281 = vld [vmem:[#allocation2 + $0x560] sm:$0xff]
    %v282 = vld [vmem:[#allocation2 + $0x568] sm:$0xff]
    %v283 = vld [vmem:[#allocation2 + $0x570] sm:$0xff]
    %v284 = vld [vmem:[#allocation2 + $0x578] sm:$0xff]
    %v285 = vld [vmem:[#allocation2 + $0x580] sm:$0xff]
    %v286 = vld [vmem:[#allocation2 + $0x588] sm:$0xff]
    %v287 = vld [vmem:[#allocation2 + $0x590] sm:$0xff]
    %v288 = vld [vmem:[#allocation2 + $0x598] sm:$0xff]
    %v289 = vld [vmem:[#allocation2 + $0x5a0] sm:$0xff]
    %v290 = vld [vmem:[#allocation2 + $0x5a8] sm:$0xff]
    %v291 = vld [vmem:[#allocation2 + $0x5b0] sm:$0xff]
    %v292 = vld [vmem:[#allocation2 + $0x5b8] sm:$0xff]
    %v293 = vld [vmem:[#allocation2 + $0x5c0] sm:$0xff]
    %v294 = vld [vmem:[#allocation2 + $0x5c8] sm:$0xff]
    %v295 = vld [vmem:[#allocation2 + $0x5d0] sm:$0xff]
    %v296 = vld [vmem:[#allocation2 + $0x5d8] sm:$0xff]
    %v297 = vld [vmem:[#allocation2 + $0x5e0] sm:$0xff]
    %v298 = vld [vmem:[#allocation2 + $0x5e8] sm:$0xff]
    %v299 = vld [vmem:[#allocation2 + $0x5f0] sm:$0xff]
    %v300 = vld [vmem:[#allocation2 + $0x5f8] sm:$0xff]
    %v301 = vld [vmem:[#allocation2 + $0x600] sm:$0xff]
    %v302 = vld [vmem:[#allocation2 + $0x608] sm:$0xff]
    %v303 = vld [vmem:[#allocation2 + $0x610] sm:$0xff]
    %v304 = vld [vmem:[#allocation2 + $0x618] sm:$0xff]
    %v305 = vld [vmem:[#allocation2 + $0x620] sm:$0xff]
    %v306 = vld [vmem:[#allocation2 + $0x628] sm:$0xff]
    %v307 = vld [vmem:[#allocation2 + $0x630] sm:$0xff]
    %v308 = vld [vmem:[#allocation2 + $0x638] sm:$0xff]
    %v309 = vld [vmem:[#allocation2 + $0x640] sm:$0xff]
    %v310 = vld [vmem:[#allocation2 + $0x648] sm:$0xff]
    %v311 = vld [vmem:[#allocation2 + $0x650] sm:$0xff]
    %v312 = vld [vmem:[#allocation2 + $0x658] sm:$0xff]
    %v313 = vld [vmem:[#allocation2 + $0x660] sm:$0xff]
    %v314 = vld [vmem:[#allocation2 + $0x668] sm:$0xff]
    %v315 = vld [vmem:[#allocation2 + $0x670] sm:$0xff]
    %v316 = vld [vmem:[#allocation2 + $0x678] sm:$0xff]
    %v317 = vld [vmem:[#allocation2 + $0x680] sm:$0xff]
    %v318 = vld [vmem:[#allocation2 + $0x688] sm:$0xff]
    %v319 = vld [vmem:[#allocation2 + $0x690] sm:$0xff]
    %v320 = vld [vmem:[#allocation2 + $0x698] sm:$0xff]
    %v321 = vld [vmem:[#allocation2 + $0x6a0] sm:$0xff]
    %v322 = vld [vmem:[#allocation2 + $0x6a8] sm:$0xff]
    %v323 = vld [vmem:[#allocation2 + $0x6b0] sm:$0xff]
    %v324 = vld [vmem:[#allocation2 + $0x6b8] sm:$0xff]
    %v325 = vld [vmem:[#allocation2 + $0x6c0] sm:$0xff]
    %v326 = vld [vmem:[#allocation2 + $0x6c8] sm:$0xff]
    %v327 = vld [vmem:[#allocation2 + $0x6d0] sm:$0xff]
    %v328 = vld [vmem:[#allocation2 + $0x6d8] sm:$0xff]
    %v329 = vld [vmem:[#allocation2 + $0x6e0] sm:$0xff]
    %v330 = vld [vmem:[#allocation2 + $0x6e8] sm:$0xff]
    %v331 = vld [vmem:[#allocation2 + $0x6f0] sm:$0xff]
    %v332 = vld [vmem:[#allocation2 + $0x6f8] sm:$0xff]
    %v333 = vld [vmem:[#allocation2 + $0x700] sm:$0xff]
    %v334 = vld [vmem:[#allocation2 + $0x708] sm:$0xff]
    %v335 = vld [vmem:[#allocation2 + $0x710] sm:$0xff]
    %v336 = vld [vmem:[#allocation2 + $0x718] sm:$0xff]
    %v337 = vld [vmem:[#allocation2 + $0x720] sm:$0xff]
    %v338 = vld [vmem:[#allocation2 + $0x728] sm:$0xff]
    %v339 = vld [vmem:[#allocation2 + $0x730] sm:$0xff]
    %v340 = vld [vmem:[#allocation2 + $0x738] sm:$0xff]
    %v341 = vld [vmem:[#allocation2 + $0x740] sm:$0xff]
    %v342 = vld [vmem:[#allocation2 + $0x748] sm:$0xff]
    %v343 = vld [vmem:[#allocation2 + $0x750] sm:$0xff]
    %v344 = vld [vmem:[#allocation2 + $0x758] sm:$0xff]
    %v345 = vld [vmem:[#allocation2 + $0x760] sm:$0xff]
    %v346 = vld [vmem:[#allocation2 + $0x768] sm:$0xff]
    %v347 = vld [vmem:[#allocation2 + $0x770] sm:$0xff]
    %v348 = vld [vmem:[#allocation2 + $0x778] sm:$0xff]
    %v349 = vld [vmem:[#allocation2 + $0x780] sm:$0xff]
    %v350 = vld [vmem:[#allocation2 + $0x788] sm:$0xff]
    %v351 = vld [vmem:[#allocation2 + $0x790] sm:$0xff]
    %v352 = vld [vmem:[#allocation2 + $0x798] sm:$0xff]
    %v353 = vld [vmem:[#allocation2 + $0x7a0] sm:$0xff]
    %v354 = vld [vmem:[#allocation2 + $0x7a8] sm:$0xff]
    %v355 = vld [vmem:[#allocation2 + $0x7b0] sm:$0xff]
    %v356 = vld [vmem:[#allocation2 + $0x7b8] sm:$0xff]
    %v357 = vld [vmem:[#allocation2 + $0x7c0] sm:$0xff]
    %v358 = vld [vmem:[#allocation2 + $0x7c8] sm:$0xff]
    %v359 = vld [vmem:[#allocation2 + $0x7d0] sm:$0xff]
    %v360 = vld [vmem:[#allocation2 + $0x7d8] sm:$0xff]
    %v361 = vld [vmem:[#allocation2 + $0x7e0] sm:$0xff]
    %v362 = vld [vmem:[#allocation2 + $0x7e8] sm:$0xff]
    %v363 = vld [vmem:[#allocation2 + $0x7f0] sm:$0xff]
    %v364 = vld [vmem:[#allocation2 + $0x7f8] sm:$0xff]
    %v365 = vld [vmem:[%s2] sm:$0xf]
    %v367 = vlaneseq
    %v368 = vshrl.u32 %v367, 7
    %v369 = vsub.s32 0, %v368
    %v370 = vrot.slane %v365, %v369
    %v371 = vlaneseq
    %v372 = vshrl.u32 %v371, 7
    %v373 = vsub.s32 1, %v372
    %v374 = vrot.slane %v365, %v373
    %v375 = vlaneseq
    %v376 = vshrl.u32 %v375, 7
    %v377 = vsub.s32 2, %v376
    %v378 = vrot.slane %v365, %v377
    %v379 = vlaneseq
    %v380 = vshrl.u32 %v379, 7
    %v381 = vsub.s32 3, %v380
    %v382 = vrot.slane %v365, %v381
    %v643 = vunpack.c.l.b16 %v109
    %v644 = vunpack.c.h.b16 %v109
    %v645 = vunpack.c.l.b16 %v110
    %v646 = vunpack.c.h.b16 %v110
    %v647 = vunpack.c.l.b16 %v111
    %v648 = vunpack.c.h.b16 %v111
    %v649 = vunpack.c.l.b16 %v112
    %v650 = vunpack.c.h.b16 %v112
    %v651 = vunpack.c.l.b16 %v113
    %v652 = vunpack.c.h.b16 %v113
    %v653 = vunpack.c.l.b16 %v114
    %v654 = vunpack.c.h.b16 %v114
    %v655 = vunpack.c.l.b16 %v115
    %v656 = vunpack.c.h.b16 %v115
    %v657 = vunpack.c.l.b16 %v116
    %v658 = vunpack.c.h.b16 %v116
    %v659 = vunpack.c.l.b16 %v117
    %v660 = vunpack.c.h.b16 %v117
    %v661 = vunpack.c.l.b16 %v118
    %v662 = vunpack.c.h.b16 %v118
    %v663 = vunpack.c.l.b16 %v119
    %v664 = vunpack.c.h.b16 %v119
    %v665 = vunpack.c.l.b16 %v120
    %v666 = vunpack.c.h.b16 %v120
    %v667 = vunpack.c.l.b16 %v121
    %v668 = vunpack.c.h.b16 %v121
    %v669 = vunpack.c.l.b16 %v122
    %v670 = vunpack.c.h.b16 %v122
    %v671 = vunpack.c.l.b16 %v123
    %v672 = vunpack.c.h.b16 %v123
    %v673 = vunpack.c.l.b16 %v124
    %v674 = vunpack.c.h.b16 %v124
    %v675 = vunpack.c.l.b16 %v125
    %v676 = vunpack.c.h.b16 %v125
    %v677 = vunpack.c.l.b16 %v126
    %v678 = vunpack.c.h.b16 %v126
    %v679 = vunpack.c.l.b16 %v127
    %v680 = vunpack.c.h.b16 %v127
    %v681 = vunpack.c.l.b16 %v128
    %v682 = vunpack.c.h.b16 %v128
    %v683 = vunpack.c.l.b16 %v129
    %v684 = vunpack.c.h.b16 %v129
    %v685 = vunpack.c.l.b16 %v130
    %v686 = vunpack.c.h.b16 %v130
    %v687 = vunpack.c.l.b16 %v131
    %v688 = vunpack.c.h.b16 %v131
    %v689 = vunpack.c.l.b16 %v132
    %v690 = vunpack.c.h.b16 %v132
    %v691 = vunpack.c.l.b16 %v133
    %v692 = vunpack.c.h.b16 %v133
    %v693 = vunpack.c.l.b16 %v134
    %v694 = vunpack.c.h.b16 %v134
    %v695 = vunpack.c.l.b16 %v135
    %v696 = vunpack.c.h.b16 %v135
    %v697 = vunpack.c.l.b16 %v136
    %v698 = vunpack.c.h.b16 %v136
    %v699 = vunpack.c.l.b16 %v137
    %v700 = vunpack.c.h.b16 %v137
    %v701 = vunpack.c.l.b16 %v138
    %v702 = vunpack.c.h.b16 %v138
    %v703 = vunpack.c.l.b16 %v139
    %v704 = vunpack.c.h.b16 %v139
    %v705 = vunpack.c.l.b16 %v140
    %v706 = vunpack.c.h.b16 %v140
    %v707 = vunpack.c.l.b16 %v141
    %v708 = vunpack.c.h.b16 %v141
    %v709 = vunpack.c.l.b16 %v142
    %v710 = vunpack.c.h.b16 %v142
    %v711 = vunpack.c.l.b16 %v143
    %v712 = vunpack.c.h.b16 %v143
    %v713 = vunpack.c.l.b16 %v144
    %v714 = vunpack.c.h.b16 %v144
    %v715 = vunpack.c.l.b16 %v145
    %v716 = vunpack.c.h.b16 %v145
    %v717 = vunpack.c.l.b16 %v146
    %v718 = vunpack.c.h.b16 %v146
    %v719 = vunpack.c.l.b16 %v147
    %v720 = vunpack.c.h.b16 %v147
    %v721 = vunpack.c.l.b16 %v148
    %v722 = vunpack.c.h.b16 %v148
    %v723 = vunpack.c.l.b16 %v149
    %v724 = vunpack.c.h.b16 %v149
    %v725 = vunpack.c.l.b16 %v150
    %v726 = vunpack.c.h.b16 %v150
    %v727 = vunpack.c.l.b16 %v151
    %v728 = vunpack.c.h.b16 %v151
    %v729 = vunpack.c.l.b16 %v152
    %v730 = vunpack.c.h.b16 %v152
    %v731 = vunpack.c.l.b16 %v153
    %v732 = vunpack.c.h.b16 %v153
    %v733 = vunpack.c.l.b16 %v154
    %v734 = vunpack.c.h.b16 %v154
    %v735 = vunpack.c.l.b16 %v155
    %v736 = vunpack.c.h.b16 %v155
    %v737 = vunpack.c.l.b16 %v156
    %v738 = vunpack.c.h.b16 %v156
    %v739 = vunpack.c.l.b16 %v157
    %v740 = vunpack.c.h.b16 %v157
    %v741 = vunpack.c.l.b16 %v158
    %v742 = vunpack.c.h.b16 %v158
    %v743 = vunpack.c.l.b16 %v159
    %v744 = vunpack.c.h.b16 %v159
    %v745 = vunpack.c.l.b16 %v160
    %v746 = vunpack.c.h.b16 %v160
    %v747 = vunpack.c.l.b16 %v161
    %v748 = vunpack.c.h.b16 %v161
    %v749 = vunpack.c.l.b16 %v162
    %v750 = vunpack.c.h.b16 %v162
    %v751 = vunpack.c.l.b16 %v163
    %v752 = vunpack.c.h.b16 %v163
    %v753 = vunpack.c.l.b16 %v164
    %v754 = vunpack.c.h.b16 %v164
    %v755 = vunpack.c.l.b16 %v165
    %v756 = vunpack.c.h.b16 %v165
    %v757 = vunpack.c.l.b16 %v166
    %v758 = vunpack.c.h.b16 %v166
    %v759 = vunpack.c.l.b16 %v167
    %v760 = vunpack.c.h.b16 %v167
    %v761 = vunpack.c.l.b16 %v168
    %v762 = vunpack.c.h.b16 %v168
    %v763 = vunpack.c.l.b16 %v169
    %v764 = vunpack.c.h.b16 %v169
    %v765 = vunpack.c.l.b16 %v170
    %v766 = vunpack.c.h.b16 %v170
    %v767 = vunpack.c.l.b16 %v171
    %v768 = vunpack.c.h.b16 %v171
    %v769 = vunpack.c.l.b16 %v172
    %v770 = vunpack.c.h.b16 %v172
    %v771 = vunpack.c.l.b16 %v173
    %v772 = vunpack.c.h.b16 %v173
    %v773 = vunpack.c.l.b16 %v174
    %v774 = vunpack.c.h.b16 %v174
    %v775 = vunpack.c.l.b16 %v175
    %v776 = vunpack.c.h.b16 %v175
    %v777 = vunpack.c.l.b16 %v176
    %v778 = vunpack.c.h.b16 %v176
    %v779 = vunpack.c.l.b16 %v177
    %v780 = vunpack.c.h.b16 %v177
    %v781 = vunpack.c.l.b16 %v178
    %v782 = vunpack.c.h.b16 %v178
    %v783 = vunpack.c.l.b16 %v179
    %v784 = vunpack.c.h.b16 %v179
    %v785 = vunpack.c.l.b16 %v180
    %v786 = vunpack.c.h.b16 %v180
    %v787 = vunpack.c.l.b16 %v181
    %v788 = vunpack.c.h.b16 %v181
    %v789 = vunpack.c.l.b16 %v182
    %v790 = vunpack.c.h.b16 %v182
    %v791 = vunpack.c.l.b16 %v183
    %v792 = vunpack.c.h.b16 %v183
    %v793 = vunpack.c.l.b16 %v184
    %v794 = vunpack.c.h.b16 %v184
    %v795 = vunpack.c.l.b16 %v185
    %v796 = vunpack.c.h.b16 %v185
    %v797 = vunpack.c.l.b16 %v186
    %v798 = vunpack.c.h.b16 %v186
    %v799 = vunpack.c.l.b16 %v187
    %v800 = vunpack.c.h.b16 %v187
    %v801 = vunpack.c.l.b16 %v188
    %v802 = vunpack.c.h.b16 %v188
    %v803 = vunpack.c.l.b16 %v189
    %v804 = vunpack.c.h.b16 %v189
    %v805 = vunpack.c.l.b16 %v190
    %v806 = vunpack.c.h.b16 %v190
    %v807 = vunpack.c.l.b16 %v191
    %v808 = vunpack.c.h.b16 %v191
    %v809 = vunpack.c.l.b16 %v192
    %v810 = vunpack.c.h.b16 %v192
    %v811 = vunpack.c.l.b16 %v193
    %v812 = vunpack.c.h.b16 %v193
    %v813 = vunpack.c.l.b16 %v194
    %v814 = vunpack.c.h.b16 %v194
    %v815 = vunpack.c.l.b16 %v195
    %v816 = vunpack.c.h.b16 %v195
    %v817 = vunpack.c.l.b16 %v196
    %v818 = vunpack.c.h.b16 %v196
    %v819 = vunpack.c.l.b16 %v197
    %v820 = vunpack.c.h.b16 %v197
    %v821 = vunpack.c.l.b16 %v198
    %v822 = vunpack.c.h.b16 %v198
    %v823 = vunpack.c.l.b16 %v199
    %v824 = vunpack.c.h.b16 %v199
    %v825 = vunpack.c.l.b16 %v200
    %v826 = vunpack.c.h.b16 %v200
    %v827 = vunpack.c.l.b16 %v201
    %v828 = vunpack.c.h.b16 %v201
    %v829 = vunpack.c.l.b16 %v202
    %v830 = vunpack.c.h.b16 %v202
    %v831 = vunpack.c.l.b16 %v203
    %v832 = vunpack.c.h.b16 %v203
    %v833 = vunpack.c.l.b16 %v204
    %v834 = vunpack.c.h.b16 %v204
    %v835 = vunpack.c.l.b16 %v205
    %v836 = vunpack.c.h.b16 %v205
    %v837 = vunpack.c.l.b16 %v206
    %v838 = vunpack.c.h.b16 %v206
    %v839 = vunpack.c.l.b16 %v207
    %v840 = vunpack.c.h.b16 %v207
    %v841 = vunpack.c.l.b16 %v208
    %v842 = vunpack.c.h.b16 %v208
    %v843 = vunpack.c.l.b16 %v209
    %v844 = vunpack.c.h.b16 %v209
    %v845 = vunpack.c.l.b16 %v210
    %v846 = vunpack.c.h.b16 %v210
    %v847 = vunpack.c.l.b16 %v211
    %v848 = vunpack.c.h.b16 %v211
    %v849 = vunpack.c.l.b16 %v212
    %v850 = vunpack.c.h.b16 %v212
    %v851 = vunpack.c.l.b16 %v213
    %v852 = vunpack.c.h.b16 %v213
    %v853 = vunpack.c.l.b16 %v214
    %v854 = vunpack.c.h.b16 %v214
    %v855 = vunpack.c.l.b16 %v215
    %v856 = vunpack.c.h.b16 %v215
    %v857 = vunpack.c.l.b16 %v216
    %v858 = vunpack.c.h.b16 %v216
    %v859 = vunpack.c.l.b16 %v217
    %v860 = vunpack.c.h.b16 %v217
    %v861 = vunpack.c.l.b16 %v218
    %v862 = vunpack.c.h.b16 %v218
    %v863 = vunpack.c.l.b16 %v219
    %v864 = vunpack.c.h.b16 %v219
    %v865 = vunpack.c.l.b16 %v220
    %v866 = vunpack.c.h.b16 %v220
    %v867 = vunpack.c.l.b16 %v221
    %v868 = vunpack.c.h.b16 %v221
    %v869 = vunpack.c.l.b16 %v222
    %v870 = vunpack.c.h.b16 %v222
    %v871 = vunpack.c.l.b16 %v223
    %v872 = vunpack.c.h.b16 %v223
    %v873 = vunpack.c.l.b16 %v224
    %v874 = vunpack.c.h.b16 %v224
    %v875 = vunpack.c.l.b16 %v225
    %v876 = vunpack.c.h.b16 %v225
    %v877 = vunpack.c.l.b16 %v226
    %v878 = vunpack.c.h.b16 %v226
    %v879 = vunpack.c.l.b16 %v227
    %v880 = vunpack.c.h.b16 %v227
    %v881 = vunpack.c.l.b16 %v228
    %v882 = vunpack.c.h.b16 %v228
    %v883 = vunpack.c.l.b16 %v229
    %v884 = vunpack.c.h.b16 %v229
    %v885 = vunpack.c.l.b16 %v230
    %v886 = vunpack.c.h.b16 %v230
    %v887 = vunpack.c.l.b16 %v231
    %v888 = vunpack.c.h.b16 %v231
    %v889 = vunpack.c.l.b16 %v232
    %v890 = vunpack.c.h.b16 %v232
    %v891 = vunpack.c.l.b16 %v233
    %v892 = vunpack.c.h.b16 %v233
    %v893 = vunpack.c.l.b16 %v234
    %v894 = vunpack.c.h.b16 %v234
    %v895 = vunpack.c.l.b16 %v235
    %v896 = vunpack.c.h.b16 %v235
    %v897 = vunpack.c.l.b16 %v236
    %v898 = vunpack.c.h.b16 %v236
    %v899 = vunpack.c.l.b16 %v237
    %v900 = vunpack.c.h.b16 %v237
    %v901 = vunpack.c.l.b16 %v238
    %v902 = vunpack.c.h.b16 %v238
    %v903 = vunpack.c.l.b16 %v239
    %v904 = vunpack.c.h.b16 %v239
    %v905 = vunpack.c.l.b16 %v240
    %v906 = vunpack.c.h.b16 %v240
    %v907 = vunpack.c.l.b16 %v241
    %v908 = vunpack.c.h.b16 %v241
    %v909 = vunpack.c.l.b16 %v242
    %v910 = vunpack.c.h.b16 %v242
    %v911 = vunpack.c.l.b16 %v243
    %v912 = vunpack.c.h.b16 %v243
    %v913 = vunpack.c.l.b16 %v244
    %v914 = vunpack.c.h.b16 %v244
    %v915 = vunpack.c.l.b16 %v245
    %v916 = vunpack.c.h.b16 %v245
    %v917 = vunpack.c.l.b16 %v246
    %v918 = vunpack.c.h.b16 %v246
    %v919 = vunpack.c.l.b16 %v247
    %v920 = vunpack.c.h.b16 %v247
    %v921 = vunpack.c.l.b16 %v248
    %v922 = vunpack.c.h.b16 %v248
    %v923 = vunpack.c.l.b16 %v249
    %v924 = vunpack.c.h.b16 %v249
    %v925 = vunpack.c.l.b16 %v250
    %v926 = vunpack.c.h.b16 %v250
    %v927 = vunpack.c.l.b16 %v251
    %v928 = vunpack.c.h.b16 %v251
    %v929 = vunpack.c.l.b16 %v252
    %v930 = vunpack.c.h.b16 %v252
    %v931 = vunpack.c.l.b16 %v253
    %v932 = vunpack.c.h.b16 %v253
    %v933 = vunpack.c.l.b16 %v254
    %v934 = vunpack.c.h.b16 %v254
    %v935 = vunpack.c.l.b16 %v255
    %v936 = vunpack.c.h.b16 %v255
    %v937 = vunpack.c.l.b16 %v256
    %v938 = vunpack.c.h.b16 %v256
    %v939 = vunpack.c.l.b16 %v257
    %v940 = vunpack.c.h.b16 %v257
    %v941 = vunpack.c.l.b16 %v258
    %v942 = vunpack.c.h.b16 %v258
    %v943 = vunpack.c.l.b16 %v259
    %v944 = vunpack.c.h.b16 %v259
    %v945 = vunpack.c.l.b16 %v260
    %v946 = vunpack.c.h.b16 %v260
    %v947 = vunpack.c.l.b16 %v261
    %v948 = vunpack.c.h.b16 %v261
    %v949 = vunpack.c.l.b16 %v262
    %v950 = vunpack.c.h.b16 %v262
    %v951 = vunpack.c.l.b16 %v263
    %v952 = vunpack.c.h.b16 %v263
    %v953 = vunpack.c.l.b16 %v264
    %v954 = vunpack.c.h.b16 %v264
    %v955 = vunpack.c.l.b16 %v265
    %v956 = vunpack.c.h.b16 %v265
    %v957 = vunpack.c.l.b16 %v266
    %v958 = vunpack.c.h.b16 %v266
    %v959 = vunpack.c.l.b16 %v267
    %v960 = vunpack.c.h.b16 %v267
    %v961 = vunpack.c.l.b16 %v268
    %v962 = vunpack.c.h.b16 %v268
    %v963 = vunpack.c.l.b16 %v269
    %v964 = vunpack.c.h.b16 %v269
    %v965 = vunpack.c.l.b16 %v270
    %v966 = vunpack.c.h.b16 %v270
    %v967 = vunpack.c.l.b16 %v271
    %v968 = vunpack.c.h.b16 %v271
    %v969 = vunpack.c.l.b16 %v272
    %v970 = vunpack.c.h.b16 %v272
    %v971 = vunpack.c.l.b16 %v273
    %v972 = vunpack.c.h.b16 %v273
    %v973 = vunpack.c.l.b16 %v274
    %v974 = vunpack.c.h.b16 %v274
    %v975 = vunpack.c.l.b16 %v275
    %v976 = vunpack.c.h.b16 %v275
    %v977 = vunpack.c.l.b16 %v276
    %v978 = vunpack.c.h.b16 %v276
    %v979 = vunpack.c.l.b16 %v277
    %v980 = vunpack.c.h.b16 %v277
    %v981 = vunpack.c.l.b16 %v278
    %v982 = vunpack.c.h.b16 %v278
    %v983 = vunpack.c.l.b16 %v279
    %v984 = vunpack.c.h.b16 %v279
    %v985 = vunpack.c.l.b16 %v280
    %v986 = vunpack.c.h.b16 %v280
    %v987 = vunpack.c.l.b16 %v281
    %v988 = vunpack.c.h.b16 %v281
    %v989 = vunpack.c.l.b16 %v282
    %v990 = vunpack.c.h.b16 %v282
    %v991 = vunpack.c.l.b16 %v283
    %v992 = vunpack.c.h.b16 %v283
    %v993 = vunpack.c.l.b16 %v284
    %v994 = vunpack.c.h.b16 %v284
    %v995 = vunpack.c.l.b16 %v285
    %v996 = vunpack.c.h.b16 %v285
    %v997 = vunpack.c.l.b16 %v286
    %v998 = vunpack.c.h.b16 %v286
    %v999 = vunpack.c.l.b16 %v287
    %v1000 = vunpack.c.h.b16 %v287
    %v1001 = vunpack.c.l.b16 %v288
    %v1002 = vunpack.c.h.b16 %v288
    %v1003 = vunpack.c.l.b16 %v289
    %v1004 = vunpack.c.h.b16 %v289
    %v1005 = vunpack.c.l.b16 %v290
    %v1006 = vunpack.c.h.b16 %v290
    %v1007 = vunpack.c.l.b16 %v291
    %v1008 = vunpack.c.h.b16 %v291
    %v1009 = vunpack.c.l.b16 %v292
    %v1010 = vunpack.c.h.b16 %v292
    %v1011 = vunpack.c.l.b16 %v293
    %v1012 = vunpack.c.h.b16 %v293
    %v1013 = vunpack.c.l.b16 %v294
    %v1014 = vunpack.c.h.b16 %v294
    %v1015 = vunpack.c.l.b16 %v295
    %v1016 = vunpack.c.h.b16 %v295
    %v1017 = vunpack.c.l.b16 %v296
    %v1018 = vunpack.c.h.b16 %v296
    %v1019 = vunpack.c.l.b16 %v297
    %v1020 = vunpack.c.h.b16 %v297
    %v1021 = vunpack.c.l.b16 %v298
    %v1022 = vunpack.c.h.b16 %v298
    %v1023 = vunpack.c.l.b16 %v299
    %v1024 = vunpack.c.h.b16 %v299
    %v1025 = vunpack.c.l.b16 %v300
    %v1026 = vunpack.c.h.b16 %v300
    %v1027 = vunpack.c.l.b16 %v301
    %v1028 = vunpack.c.h.b16 %v301
    %v1029 = vunpack.c.l.b16 %v302
    %v1030 = vunpack.c.h.b16 %v302
    %v1031 = vunpack.c.l.b16 %v303
    %v1032 = vunpack.c.h.b16 %v303
    %v1033 = vunpack.c.l.b16 %v304
    %v1034 = vunpack.c.h.b16 %v304
    %v1035 = vunpack.c.l.b16 %v305
    %v1036 = vunpack.c.h.b16 %v305
    %v1037 = vunpack.c.l.b16 %v306
    %v1038 = vunpack.c.h.b16 %v306
    %v1039 = vunpack.c.l.b16 %v307
    %v1040 = vunpack.c.h.b16 %v307
    %v1041 = vunpack.c.l.b16 %v308
    %v1042 = vunpack.c.h.b16 %v308
    %v1043 = vunpack.c.l.b16 %v309
    %v1044 = vunpack.c.h.b16 %v309
    %v1045 = vunpack.c.l.b16 %v310
    %v1046 = vunpack.c.h.b16 %v310
    %v1047 = vunpack.c.l.b16 %v311
    %v1048 = vunpack.c.h.b16 %v311
    %v1049 = vunpack.c.l.b16 %v312
    %v1050 = vunpack.c.h.b16 %v312
    %v1051 = vunpack.c.l.b16 %v313
    %v1052 = vunpack.c.h.b16 %v313
    %v1053 = vunpack.c.l.b16 %v314
    %v1054 = vunpack.c.h.b16 %v314
    %v1055 = vunpack.c.l.b16 %v315
    %v1056 = vunpack.c.h.b16 %v315
    %v1057 = vunpack.c.l.b16 %v316
    %v1058 = vunpack.c.h.b16 %v316
    %v1059 = vunpack.c.l.b16 %v317
    %v1060 = vunpack.c.h.b16 %v317
    %v1061 = vunpack.c.l.b16 %v318
    %v1062 = vunpack.c.h.b16 %v318
    %v1063 = vunpack.c.l.b16 %v319
    %v1064 = vunpack.c.h.b16 %v319
    %v1065 = vunpack.c.l.b16 %v320
    %v1066 = vunpack.c.h.b16 %v320
    %v1067 = vunpack.c.l.b16 %v321
    %v1068 = vunpack.c.h.b16 %v321
    %v1069 = vunpack.c.l.b16 %v322
    %v1070 = vunpack.c.h.b16 %v322
    %v1071 = vunpack.c.l.b16 %v323
    %v1072 = vunpack.c.h.b16 %v323
    %v1073 = vunpack.c.l.b16 %v324
    %v1074 = vunpack.c.h.b16 %v324
    %v1075 = vunpack.c.l.b16 %v325
    %v1076 = vunpack.c.h.b16 %v325
    %v1077 = vunpack.c.l.b16 %v326
    %v1078 = vunpack.c.h.b16 %v326
    %v1079 = vunpack.c.l.b16 %v327
    %v1080 = vunpack.c.h.b16 %v327
    %v1081 = vunpack.c.l.b16 %v328
    %v1082 = vunpack.c.h.b16 %v328
    %v1083 = vunpack.c.l.b16 %v329
    %v1084 = vunpack.c.h.b16 %v329
    %v1085 = vunpack.c.l.b16 %v330
    %v1086 = vunpack.c.h.b16 %v330
    %v1087 = vunpack.c.l.b16 %v331
    %v1088 = vunpack.c.h.b16 %v331
    %v1089 = vunpack.c.l.b16 %v332
    %v1090 = vunpack.c.h.b16 %v332
    %v1091 = vunpack.c.l.b16 %v333
    %v1092 = vunpack.c.h.b16 %v333
    %v1093 = vunpack.c.l.b16 %v334
    %v1094 = vunpack.c.h.b16 %v334
    %v1095 = vunpack.c.l.b16 %v335
    %v1096 = vunpack.c.h.b16 %v335
    %v1097 = vunpack.c.l.b16 %v336
    %v1098 = vunpack.c.h.b16 %v336
    %v1099 = vunpack.c.l.b16 %v337
    %v1100 = vunpack.c.h.b16 %v337
    %v1101 = vunpack.c.l.b16 %v338
    %v1102 = vunpack.c.h.b16 %v338
    %v1103 = vunpack.c.l.b16 %v339
    %v1104 = vunpack.c.h.b16 %v339
    %v1105 = vunpack.c.l.b16 %v340
    %v1106 = vunpack.c.h.b16 %v340
    %v1107 = vunpack.c.l.b16 %v341
    %v1108 = vunpack.c.h.b16 %v341
    %v1109 = vunpack.c.l.b16 %v342
    %v1110 = vunpack.c.h.b16 %v342
    %v1111 = vunpack.c.l.b16 %v343
    %v1112 = vunpack.c.h.b16 %v343
    %v1113 = vunpack.c.l.b16 %v344
    %v1114 = vunpack.c.h.b16 %v344
    %v1115 = vunpack.c.l.b16 %v345
    %v1116 = vunpack.c.h.b16 %v345
    %v1117 = vunpack.c.l.b16 %v346
    %v1118 = vunpack.c.h.b16 %v346
    %v1119 = vunpack.c.l.b16 %v347
    %v1120 = vunpack.c.h.b16 %v347
    %v1121 = vunpack.c.l.b16 %v348
    %v1122 = vunpack.c.h.b16 %v348
    %v1123 = vunpack.c.l.b16 %v349
    %v1124 = vunpack.c.h.b16 %v349
    %v1125 = vunpack.c.l.b16 %v350
    %v1126 = vunpack.c.h.b16 %v350
    %v1127 = vunpack.c.l.b16 %v351
    %v1128 = vunpack.c.h.b16 %v351
    %v1129 = vunpack.c.l.b16 %v352
    %v1130 = vunpack.c.h.b16 %v352
    %v1131 = vunpack.c.l.b16 %v353
    %v1132 = vunpack.c.h.b16 %v353
    %v1133 = vunpack.c.l.b16 %v354
    %v1134 = vunpack.c.h.b16 %v354
    %v1135 = vunpack.c.l.b16 %v355
    %v1136 = vunpack.c.h.b16 %v355
    %v1137 = vunpack.c.l.b16 %v356
    %v1138 = vunpack.c.h.b16 %v356
    %v1139 = vunpack.c.l.b16 %v357
    %v1140 = vunpack.c.h.b16 %v357
    %v1141 = vunpack.c.l.b16 %v358
    %v1142 = vunpack.c.h.b16 %v358
    %v1143 = vunpack.c.l.b16 %v359
    %v1144 = vunpack.c.h.b16 %v359
    %v1145 = vunpack.c.l.b16 %v360
    %v1146 = vunpack.c.h.b16 %v360
    %v1147 = vunpack.c.l.b16 %v361
    %v1148 = vunpack.c.h.b16 %v361
    %v1149 = vunpack.c.l.b16 %v362
    %v1150 = vunpack.c.h.b16 %v362
    %v1151 = vunpack.c.l.b16 %v363
    %v1152 = vunpack.c.h.b16 %v363
    %v1153 = vunpack.c.l.b16 %v364
    %v1154 = vunpack.c.h.b16 %v364
    %v1155 = vpack.c.b16 %v647, %v643
    %v1156 = vpack.c.b16 %v648, %v644
    %v1157 = vpack.c.b16 %v649, %v645
    %v1158 = vpack.c.b16 %v650, %v646
    %v1159 = vpack.c.b16 %v655, %v651
    %v1160 = vpack.c.b16 %v656, %v652
    %v1161 = vpack.c.b16 %v657, %v653
    %v1162 = vpack.c.b16 %v658, %v654
    %v1163 = vpack.c.b16 %v663, %v659
    %v1164 = vpack.c.b16 %v664, %v660
    %v1165 = vpack.c.b16 %v665, %v661
    %v1166 = vpack.c.b16 %v666, %v662
    %v1167 = vpack.c.b16 %v671, %v667
    %v1168 = vpack.c.b16 %v672, %v668
    %v1169 = vpack.c.b16 %v673, %v669
    %v1170 = vpack.c.b16 %v674, %v670
    %v1171 = vpack.c.b16 %v679, %v675
    %v1172 = vpack.c.b16 %v680, %v676
    %v1173 = vpack.c.b16 %v681, %v677
    %v1174 = vpack.c.b16 %v682, %v678
    %v1175 = vpack.c.b16 %v687, %v683
    %v1176 = vpack.c.b16 %v688, %v684
    %v1177 = vpack.c.b16 %v689, %v685
    %v1178 = vpack.c.b16 %v690, %v686
    %v1179 = vpack.c.b16 %v695, %v691
    %v1180 = vpack.c.b16 %v696, %v692
    %v1181 = vpack.c.b16 %v697, %v693
    %v1182 = vpack.c.b16 %v698, %v694
    %v1183 = vpack.c.b16 %v703, %v699
    %v1184 = vpack.c.b16 %v704, %v700
    %v1185 = vpack.c.b16 %v705, %v701
    %v1186 = vpack.c.b16 %v706, %v702
    %v1187 = vpack.c.b16 %v711, %v707
    %v1188 = vpack.c.b16 %v712, %v708
    %v1189 = vpack.c.b16 %v713, %v709
    %v1190 = vpack.c.b16 %v714, %v710
    %v1191 = vpack.c.b16 %v719, %v715
    %v1192 = vpack.c.b16 %v720, %v716
    %v1193 = vpack.c.b16 %v721, %v717
    %v1194 = vpack.c.b16 %v722, %v718
    %v1195 = vpack.c.b16 %v727, %v723
    %v1196 = vpack.c.b16 %v728, %v724
    %v1197 = vpack.c.b16 %v729, %v725
    %v1198 = vpack.c.b16 %v730, %v726
    %v1199 = vpack.c.b16 %v735, %v731
    %v1200 = vpack.c.b16 %v736, %v732
    %v1201 = vpack.c.b16 %v737, %v733
    %v1202 = vpack.c.b16 %v738, %v734
    %v1203 = vpack.c.b16 %v743, %v739
    %v1204 = vpack.c.b16 %v744, %v740
    %v1205 = vpack.c.b16 %v745, %v741
    %v1206 = vpack.c.b16 %v746, %v742
    %v1207 = vpack.c.b16 %v751, %v747
    %v1208 = vpack.c.b16 %v752, %v748
    %v1209 = vpack.c.b16 %v753, %v749
    %v1210 = vpack.c.b16 %v754, %v750
    %v1211 = vpack.c.b16 %v759, %v755
    %v1212 = vpack.c.b16 %v760, %v756
    %v1213 = vpack.c.b16 %v761, %v757
    %v1214 = vpack.c.b16 %v762, %v758
    %v1215 = vpack.c.b16 %v767, %v763
    %v1216 = vpack.c.b16 %v768, %v764
    %v1217 = vpack.c.b16 %v769, %v765
    %v1218 = vpack.c.b16 %v770, %v766
    %v1219 = vpack.c.b16 %v775, %v771
    %v1220 = vpack.c.b16 %v776, %v772
    %v1221 = vpack.c.b16 %v777, %v773
    %v1222 = vpack.c.b16 %v778, %v774
    %v1223 = vpack.c.b16 %v783, %v779
    %v1224 = vpack.c.b16 %v784, %v780
    %v1225 = vpack.c.b16 %v785, %v781
    %v1226 = vpack.c.b16 %v786, %v782
    %v1227 = vpack.c.b16 %v791, %v787
    %v1228 = vpack.c.b16 %v792, %v788
    %v1229 = vpack.c.b16 %v793, %v789
    %v1230 = vpack.c.b16 %v794, %v790
    %v1231 = vpack.c.b16 %v799, %v795
    %v1232 = vpack.c.b16 %v800, %v796
    %v1233 = vpack.c.b16 %v801, %v797
    %v1234 = vpack.c.b16 %v802, %v798
    %v1235 = vpack.c.b16 %v807, %v803
    %v1236 = vpack.c.b16 %v808, %v804
    %v1237 = vpack.c.b16 %v809, %v805
    %v1238 = vpack.c.b16 %v810, %v806
    %v1239 = vpack.c.b16 %v815, %v811
    %v1240 = vpack.c.b16 %v816, %v812
    %v1241 = vpack.c.b16 %v817, %v813
    %v1242 = vpack.c.b16 %v818, %v814
    %v1243 = vpack.c.b16 %v823, %v819
    %v1244 = vpack.c.b16 %v824, %v820
    %v1245 = vpack.c.b16 %v825, %v821
    %v1246 = vpack.c.b16 %v826, %v822
    %v1247 = vpack.c.b16 %v831, %v827
    %v1248 = vpack.c.b16 %v832, %v828
    %v1249 = vpack.c.b16 %v833, %v829
    %v1250 = vpack.c.b16 %v834, %v830
    %v1251 = vpack.c.b16 %v839, %v835
    %v1252 = vpack.c.b16 %v840, %v836
    %v1253 = vpack.c.b16 %v841, %v837
    %v1254 = vpack.c.b16 %v842, %v838
    %v1255 = vpack.c.b16 %v847, %v843
    %v1256 = vpack.c.b16 %v848, %v844
    %v1257 = vpack.c.b16 %v849, %v845
    %v1258 = vpack.c.b16 %v850, %v846
    %v1259 = vpack.c.b16 %v855, %v851
    %v1260 = vpack.c.b16 %v856, %v852
    %v1261 = vpack.c.b16 %v857, %v853
    %v1262 = vpack.c.b16 %v858, %v854
    %v1263 = vpack.c.b16 %v863, %v859
    %v1264 = vpack.c.b16 %v864, %v860
    %v1265 = vpack.c.b16 %v865, %v861
    %v1266 = vpack.c.b16 %v866, %v862
    %v1267 = vpack.c.b16 %v871, %v867
    %v1268 = vpack.c.b16 %v872, %v868
    %v1269 = vpack.c.b16 %v873, %v869
    %v1270 = vpack.c.b16 %v874, %v870
    %v1271 = vpack.c.b16 %v879, %v875
    %v1272 = vpack.c.b16 %v880, %v876
    %v1273 = vpack.c.b16 %v881, %v877
    %v1274 = vpack.c.b16 %v882, %v878
    %v1275 = vpack.c.b16 %v887, %v883
    %v1276 = vpack.c.b16 %v888, %v884
    %v1277 = vpack.c.b16 %v889, %v885
    %v1278 = vpack.c.b16 %v890, %v886
    %v1279 = vpack.c.b16 %v895, %v891
    %v1280 = vpack.c.b16 %v896, %v892
    %v1281 = vpack.c.b16 %v897, %v893
    %v1282 = vpack.c.b16 %v898, %v894
    %v1283 = vpack.c.b16 %v903, %v899
    %v1284 = vpack.c.b16 %v904, %v900
    %v1285 = vpack.c.b16 %v905, %v901
    %v1286 = vpack.c.b16 %v906, %v902
    %v1287 = vpack.c.b16 %v911, %v907
    %v1288 = vpack.c.b16 %v912, %v908
    %v1289 = vpack.c.b16 %v913, %v909
    %v1290 = vpack.c.b16 %v914, %v910
    %v1291 = vpack.c.b16 %v919, %v915
    %v1292 = vpack.c.b16 %v920, %v916
    %v1293 = vpack.c.b16 %v921, %v917
    %v1294 = vpack.c.b16 %v922, %v918
    %v1295 = vpack.c.b16 %v927, %v923
    %v1296 = vpack.c.b16 %v928, %v924
    %v1297 = vpack.c.b16 %v929, %v925
    %v1298 = vpack.c.b16 %v930, %v926
    %v1299 = vpack.c.b16 %v935, %v931
    %v1300 = vpack.c.b16 %v936, %v932
    %v1301 = vpack.c.b16 %v937, %v933
    %v1302 = vpack.c.b16 %v938, %v934
    %v1303 = vpack.c.b16 %v943, %v939
    %v1304 = vpack.c.b16 %v944, %v940
    %v1305 = vpack.c.b16 %v945, %v941
    %v1306 = vpack.c.b16 %v946, %v942
    %v1307 = vpack.c.b16 %v951, %v947
    %v1308 = vpack.c.b16 %v952, %v948
    %v1309 = vpack.c.b16 %v953, %v949
    %v1310 = vpack.c.b16 %v954, %v950
    %v1311 = vpack.c.b16 %v959, %v955
    %v1312 = vpack.c.b16 %v960, %v956
    %v1313 = vpack.c.b16 %v961, %v957
    %v1314 = vpack.c.b16 %v962, %v958
    %v1315 = vpack.c.b16 %v967, %v963
    %v1316 = vpack.c.b16 %v968, %v964
    %v1317 = vpack.c.b16 %v969, %v965
    %v1318 = vpack.c.b16 %v970, %v966
    %v1319 = vpack.c.b16 %v975, %v971
    %v1320 = vpack.c.b16 %v976, %v972
    %v1321 = vpack.c.b16 %v977, %v973
    %v1322 = vpack.c.b16 %v978, %v974
    %v1323 = vpack.c.b16 %v983, %v979
    %v1324 = vpack.c.b16 %v984, %v980
    %v1325 = vpack.c.b16 %v985, %v981
    %v1326 = vpack.c.b16 %v986, %v982
    %v1327 = vpack.c.b16 %v991, %v987
    %v1328 = vpack.c.b16 %v992, %v988
    %v1329 = vpack.c.b16 %v993, %v989
    %v1330 = vpack.c.b16 %v994, %v990
    %v1331 = vpack.c.b16 %v999, %v995
    %v1332 = vpack.c.b16 %v1000, %v996
    %v1333 = vpack.c.b16 %v1001, %v997
    %v1334 = vpack.c.b16 %v1002, %v998
    %v1335 = vpack.c.b16 %v1007, %v1003
    %v1336 = vpack.c.b16 %v1008, %v1004
    %v1337 = vpack.c.b16 %v1009, %v1005
    %v1338 = vpack.c.b16 %v1010, %v1006
    %v1339 = vpack.c.b16 %v1015, %v1011
    %v1340 = vpack.c.b16 %v1016, %v1012
    %v1341 = vpack.c.b16 %v1017, %v1013
    %v1342 = vpack.c.b16 %v1018, %v1014
    %v1343 = vpack.c.b16 %v1023, %v1019
    %v1344 = vpack.c.b16 %v1024, %v1020
    %v1345 = vpack.c.b16 %v1025, %v1021
    %v1346 = vpack.c.b16 %v1026, %v1022
    %v1347 = vpack.c.b16 %v1031, %v1027
    %v1348 = vpack.c.b16 %v1032, %v1028
    %v1349 = vpack.c.b16 %v1033, %v1029
    %v1350 = vpack.c.b16 %v1034, %v1030
    %v1351 = vpack.c.b16 %v1039, %v1035
    %v1352 = vpack.c.b16 %v1040, %v1036
    %v1353 = vpack.c.b16 %v1041, %v1037
    %v1354 = vpack.c.b16 %v1042, %v1038
    %v1355 = vpack.c.b16 %v1047, %v1043
    %v1356 = vpack.c.b16 %v1048, %v1044
    %v1357 = vpack.c.b16 %v1049, %v1045
    %v1358 = vpack.c.b16 %v1050, %v1046
    %v1359 = vpack.c.b16 %v1055, %v1051
    %v1360 = vpack.c.b16 %v1056, %v1052
    %v1361 = vpack.c.b16 %v1057, %v1053
    %v1362 = vpack.c.b16 %v1058, %v1054
    %v1363 = vpack.c.b16 %v1063, %v1059
    %v1364 = vpack.c.b16 %v1064, %v1060
    %v1365 = vpack.c.b16 %v1065, %v1061
    %v1366 = vpack.c.b16 %v1066, %v1062
    %v1367 = vpack.c.b16 %v1071, %v1067
    %v1368 = vpack.c.b16 %v1072, %v1068
    %v1369 = vpack.c.b16 %v1073, %v1069
    %v1370 = vpack.c.b16 %v1074, %v1070
    %v1371 = vpack.c.b16 %v1079, %v1075
    %v1372 = vpack.c.b16 %v1080, %v1076
    %v1373 = vpack.c.b16 %v1081, %v1077
    %v1374 = vpack.c.b16 %v1082, %v1078
    %v1375 = vpack.c.b16 %v1087, %v1083
    %v1376 = vpack.c.b16 %v1088, %v1084
    %v1377 = vpack.c.b16 %v1089, %v1085
    %v1378 = vpack.c.b16 %v1090, %v1086
    %v1379 = vpack.c.b16 %v1095, %v1091
    %v1380 = vpack.c.b16 %v1096, %v1092
    %v1381 = vpack.c.b16 %v1097, %v1093
    %v1382 = vpack.c.b16 %v1098, %v1094
    %v1383 = vpack.c.b16 %v1103, %v1099
    %v1384 = vpack.c.b16 %v1104, %v1100
    %v1385 = vpack.c.b16 %v1105, %v1101
    %v1386 = vpack.c.b16 %v1106, %v1102
    %v1387 = vpack.c.b16 %v1111, %v1107
    %v1388 = vpack.c.b16 %v1112, %v1108
    %v1389 = vpack.c.b16 %v1113, %v1109
    %v1390 = vpack.c.b16 %v1114, %v1110
    %v1391 = vpack.c.b16 %v1119, %v1115
    %v1392 = vpack.c.b16 %v1120, %v1116
    %v1393 = vpack.c.b16 %v1121, %v1117
    %v1394 = vpack.c.b16 %v1122, %v1118
    %v1395 = vpack.c.b16 %v1127, %v1123
    %v1396 = vpack.c.b16 %v1128, %v1124
    %v1397 = vpack.c.b16 %v1129, %v1125
    %v1398 = vpack.c.b16 %v1130, %v1126
    %v1399 = vpack.c.b16 %v1135, %v1131
    %v1400 = vpack.c.b16 %v1136, %v1132
    %v1401 = vpack.c.b16 %v1137, %v1133
    %v1402 = vpack.c.b16 %v1138, %v1134
    %v1403 = vpack.c.b16 %v1143, %v1139
    %v1404 = vpack.c.b16 %v1144, %v1140
    %v1405 = vpack.c.b16 %v1145, %v1141
    %v1406 = vpack.c.b16 %v1146, %v1142
    %v1407 = vpack.c.b16 %v1151, %v1147
    %v1408 = vpack.c.b16 %v1152, %v1148
    %v1409 = vpack.c.b16 %v1153, %v1149
    %v1410 = vpack.c.b16 %v1154, %v1150
    %1667 = vmatprep.subr.bf16.mxu0 %v1184
    %1668 = vmatpush1.bf16.msra.mxu0 %v1183
    %1669 = vmatprep.subr.bf16.mxu0 %v1180
    %1670 = vmatpush1.bf16.msra.mxu0 %v1179
    %1671 = vmatprep.subr.bf16.mxu0 %v1176
    %1672 = vmatpush1.bf16.msra.mxu0 %v1175
    %1673 = vmatprep.subr.bf16.mxu0 %v1172
    %1674 = vmatpush1.bf16.msra.mxu0 %v1171
    %1675 = vmatprep.subr.bf16.mxu0 %v1168
    %1676 = vmatpush1.bf16.msra.mxu0 %v1167
    %1677 = vmatprep.subr.bf16.mxu0 %v1164
    %1678 = vmatpush1.bf16.msra.mxu0 %v1163
    %1679 = vmatprep.subr.bf16.mxu0 %v1160
    %1680 = vmatpush1.bf16.msra.mxu0 %v1159
    %1681 = vmatprep.subr.bf16.mxu0 %v1156
    %1682 = vmatpush1.bf16.msra.mxu0 %v1155
    %1683 = vmatprep.subr.bf16.mxu0 %v1216
    %1684 = vmatpush2.bf16.msra.mxu0 %v1215
    %1685 = vmatprep.subr.bf16.mxu0 %v1212
    %1686 = vmatpush2.bf16.msra.mxu0 %v1211
    %1687 = vmatprep.subr.bf16.mxu0 %v1208
    %1688 = vmatpush2.bf16.msra.mxu0 %v1207
    %1689 = vmatprep.subr.bf16.mxu0 %v1204
    %1690 = vmatpush2.bf16.msra.mxu0 %v1203
    %1691 = vmatprep.subr.bf16.mxu0 %v1200
    %1692 = vmatpush2.bf16.msra.mxu0 %v1199
    %1693 = vmatprep.subr.bf16.mxu0 %v1196
    %1694 = vmatpush2.bf16.msra.mxu0 %v1195
    %1695 = vmatprep.subr.bf16.mxu0 %v1192
    %1696 = vmatpush2.bf16.msra.mxu0 %v1191
    %1697 = vmatprep.subr.bf16.mxu0 %v1188
    %1698 = vmatpush2.bf16.msra.mxu0 %v1187
    %1699 = vmatprep.mubr.bf16.mxu0 %v102
    %1700 = vmatmul.mubr.bf16.gmra.mxu0 %v101
    %v1701 = vpop.f32.mrf.mxu0
    %v1702 = vadd.f32 %v370, %v1701
    %v1703 = vpop.f32.mrf.mxu0
    %v1704 = vadd.f32 %v374, %v1703
    %v1705 = vpop.f32.mrf.mxu0
    %v1706 = vpop.f32.mrf.mxu0
    %1707 = vdwg.mxu0
    %1708 = vmatprep.subr.bf16.mxu0 %v1248
    %1709 = vmatpush1.bf16.msra.mxu0 %v1247
    %1710 = vmatprep.subr.bf16.mxu0 %v1244
    %1711 = vmatpush1.bf16.msra.mxu0 %v1243
    %1712 = vmatprep.subr.bf16.mxu0 %v1240
    %1713 = vmatpush1.bf16.msra.mxu0 %v1239
    %1714 = vmatprep.subr.bf16.mxu0 %v1236
    %1715 = vmatpush1.bf16.msra.mxu0 %v1235
    %1716 = vmatprep.subr.bf16.mxu0 %v1232
    %1717 = vmatpush1.bf16.msra.mxu0 %v1231
    %1718 = vmatprep.subr.bf16.mxu0 %v1228
    %1719 = vmatpush1.bf16.msra.mxu0 %v1227
    %1720 = vmatprep.subr.bf16.mxu0 %v1224
    %1721 = vmatpush1.bf16.msra.mxu0 %v1223
    %1722 = vmatprep.subr.bf16.mxu0 %v1220
    %1723 = vmatpush1.bf16.msra.mxu0 %v1219
    %1724 = vmatprep.subr.bf16.mxu0 %v1280
    %1725 = vmatpush2.bf16.msra.mxu0 %v1279
    %1726 = vmatprep.subr.bf16.mxu0 %v1276
    %1727 = vmatpush2.bf16.msra.mxu0 %v1275
    %1728 = vmatprep.subr.bf16.mxu0 %v1272
    %1729 = vmatpush2.bf16.msra.mxu0 %v1271
    %1730 = vmatprep.subr.bf16.mxu0 %v1268
    %1731 = vmatpush2.bf16.msra.mxu0 %v1267
    %1732 = vmatprep.subr.bf16.mxu0 %v1264
    %1733 = vmatpush2.bf16.msra.mxu0 %v1263
    %1734 = vmatprep.subr.bf16.mxu0 %v1260
    %1735 = vmatpush2.bf16.msra.mxu0 %v1259
    %1736 = vmatprep.subr.bf16.mxu0 %v1256
    %1737 = vmatpush2.bf16.msra.mxu0 %v1255
    %1738 = vmatprep.subr.bf16.mxu0 %v1252
    %1739 = vmatpush2.bf16.msra.mxu0 %v1251
    %1740 = vmatprep.mubr.bf16.mxu0 %v104
    %1741 = vmatmul.mubr.bf16.gmra.mxu0 %v103
    %v1742 = vpop.f32.mrf.mxu0
    %v1743 = vadd.f32 %v1702, %v1742
    %v1744 = vpop.f32.mrf.mxu0
    %v1745 = vadd.f32 %v1704, %v1744
    %v1746 = vpop.f32.mrf.mxu0
    %v1747 = vpop.f32.mrf.mxu0
    %1748 = vdwg.mxu0
    %1749 = vmatprep.subr.bf16.mxu0 %v1312
    %1750 = vmatpush1.bf16.msra.mxu0 %v1311
    %1751 = vmatprep.subr.bf16.mxu0 %v1308
    %1752 = vmatpush1.bf16.msra.mxu0 %v1307
    %1753 = vmatprep.subr.bf16.mxu0 %v1304
    %1754 = vmatpush1.bf16.msra.mxu0 %v1303
    %1755 = vmatprep.subr.bf16.mxu0 %v1300
    %1756 = vmatpush1.bf16.msra.mxu0 %v1299
    %1757 = vmatprep.subr.bf16.mxu0 %v1296
    %1758 = vmatpush1.bf16.msra.mxu0 %v1295
    %1759 = vmatprep.subr.bf16.mxu0 %v1292
    %1760 = vmatpush1.bf16.msra.mxu0 %v1291
    %1761 = vmatprep.subr.bf16.mxu0 %v1288
    %1762 = vmatpush1.bf16.msra.mxu0 %v1287
    %1763 = vmatprep.subr.bf16.mxu0 %v1284
    %1764 = vmatpush1.bf16.msra.mxu0 %v1283
    %1765 = vmatprep.subr.bf16.mxu0 %v1344
    %1766 = vmatpush2.bf16.msra.mxu0 %v1343
    %1767 = vmatprep.subr.bf16.mxu0 %v1340
    %1768 = vmatpush2.bf16.msra.mxu0 %v1339
    %1769 = vmatprep.subr.bf16.mxu0 %v1336
    %1770 = vmatpush2.bf16.msra.mxu0 %v1335
    %1771 = vmatprep.subr.bf16.mxu0 %v1332
    %1772 = vmatpush2.bf16.msra.mxu0 %v1331
    %1773 = vmatprep.subr.bf16.mxu0 %v1328
    %1774 = vmatpush2.bf16.msra.mxu0 %v1327
    %1775 = vmatprep.subr.bf16.mxu0 %v1324
    %1776 = vmatpush2.bf16.msra.mxu0 %v1323
    %1777 = vmatprep.subr.bf16.mxu0 %v1320
    %1778 = vmatpush2.bf16.msra.mxu0 %v1319
    %1779 = vmatprep.subr.bf16.mxu0 %v1316
    %1780 = vmatpush2.bf16.msra.mxu0 %v1315
    %1781 = vmatprep.mubr.bf16.mxu0 %v106
    %1782 = vmatmul.mubr.bf16.gmra.mxu0 %v105
    %v1783 = vpop.f32.mrf.mxu0
    %v1784 = vadd.f32 %v1743, %v1783
    %v1785 = vpop.f32.mrf.mxu0
    %v1786 = vadd.f32 %v1745, %v1785
    %v1787 = vpop.f32.mrf.mxu0
    %v1788 = vpop.f32.mrf.mxu0
    %1789 = vdwg.mxu0
    %1790 = vmatprep.subr.bf16.mxu0 %v1376
    %1791 = vmatpush1.bf16.msra.mxu0 %v1375
    %1792 = vmatprep.subr.bf16.mxu0 %v1372
    %1793 = vmatpush1.bf16.msra.mxu0 %v1371
    %1794 = vmatprep.subr.bf16.mxu0 %v1368
    %1795 = vmatpush1.bf16.msra.mxu0 %v1367
    %1796 = vmatprep.subr.bf16.mxu0 %v1364
    %1797 = vmatpush1.bf16.msra.mxu0 %v1363
    %1798 = vmatprep.subr.bf16.mxu0 %v1360
    %1799 = vmatpush1.bf16.msra.mxu0 %v1359
    %1800 = vmatprep.subr.bf16.mxu0 %v1356
    %1801 = vmatpush1.bf16.msra.mxu0 %v1355
    %1802 = vmatprep.subr.bf16.mxu0 %v1352
    %1803 = vmatpush1.bf16.msra.mxu0 %v1351
    %1804 = vmatprep.subr.bf16.mxu0 %v1348
    %1805 = vmatpush1.bf16.msra.mxu0 %v1347
    %1806 = vmatprep.subr.bf16.mxu0 %v1408
    %1807 = vmatpush2.bf16.msra.mxu0 %v1407
    %1808 = vmatprep.subr.bf16.mxu0 %v1404
    %1809 = vmatpush2.bf16.msra.mxu0 %v1403
    %1810 = vmatprep.subr.bf16.mxu0 %v1400
    %1811 = vmatpush2.bf16.msra.mxu0 %v1399
    %1812 = vmatprep.subr.bf16.mxu0 %v1396
    %1813 = vmatpush2.bf16.msra.mxu0 %v1395
    %1814 = vmatprep.subr.bf16.mxu0 %v1392
    %1815 = vmatpush2.bf16.msra.mxu0 %v1391
    %1816 = vmatprep.subr.bf16.mxu0 %v1388
    %1817 = vmatpush2.bf16.msra.mxu0 %v1387
    %1818 = vmatprep.subr.bf16.mxu0 %v1384
    %1819 = vmatpush2.bf16.msra.mxu0 %v1383
    %1820 = vmatprep.subr.bf16.mxu0 %v1380
    %1821 = vmatpush2.bf16.msra.mxu0 %v1379
    %1822 = vmatprep.mubr.bf16.mxu0 %v108
    %1823 = vmatmul.mubr.bf16.gmra.mxu0 %v107
    %v1824 = vpop.f32.mrf.mxu0
    %v1825 = vadd.f32 %v1784, %v1824
    %v1826 = vpop.f32.mrf.mxu0
    %v1827 = vadd.f32 %v1786, %v1826
    %v1828 = vpop.f32.mrf.mxu0
    %v1829 = vpop.f32.mrf.mxu0
    %1830 = vdwg.mxu0
    %1831 = vmatprep.subr.bf16.mxu0 %v1186
    %1832 = vmatpush1.bf16.msra.mxu0 %v1185
    %1833 = vmatprep.subr.bf16.mxu0 %v1182
    %1834 = vmatpush1.bf16.msra.mxu0 %v1181
    %1835 = vmatprep.subr.bf16.mxu0 %v1178
    %1836 = vmatpush1.bf16.msra.mxu0 %v1177
    %1837 = vmatprep.subr.bf16.mxu0 %v1174
    %1838 = vmatpush1.bf16.msra.mxu0 %v1173
    %1839 = vmatprep.subr.bf16.mxu0 %v1170
    %1840 = vmatpush1.bf16.msra.mxu0 %v1169
    %1841 = vmatprep.subr.bf16.mxu0 %v1166
    %1842 = vmatpush1.bf16.msra.mxu0 %v1165
    %1843 = vmatprep.subr.bf16.mxu0 %v1162
    %1844 = vmatpush1.bf16.msra.mxu0 %v1161
    %1845 = vmatprep.subr.bf16.mxu0 %v1158
    %1846 = vmatpush1.bf16.msra.mxu0 %v1157
    %1847 = vmatprep.subr.bf16.mxu0 %v1218
    %1848 = vmatpush2.bf16.msra.mxu0 %v1217
    %1849 = vmatprep.subr.bf16.mxu0 %v1214
    %1850 = vmatpush2.bf16.msra.mxu0 %v1213
    %1851 = vmatprep.subr.bf16.mxu0 %v1210
    %1852 = vmatpush2.bf16.msra.mxu0 %v1209
    %1853 = vmatprep.subr.bf16.mxu0 %v1206
    %1854 = vmatpush2.bf16.msra.mxu0 %v1205
    %1855 = vmatprep.subr.bf16.mxu0 %v1202
    %1856 = vmatpush2.bf16.msra.mxu0 %v1201
    %1857 = vmatprep.subr.bf16.mxu0 %v1198
    %1858 = vmatpush2.bf16.msra.mxu0 %v1197
    %1859 = vmatprep.subr.bf16.mxu0 %v1194
    %1860 = vmatpush2.bf16.msra.mxu0 %v1193
    %1861 = vmatprep.subr.bf16.mxu0 %v1190
    %1862 = vmatpush2.bf16.msra.mxu0 %v1189
    %1863 = vmatprep.mubr.bf16.mxu0 %v102
    %1864 = vmatmul.mubr.bf16.gmra.mxu0 %v101
    %v1865 = vpop.f32.mrf.mxu0
    %v1866 = vadd.f32 %v378, %v1865
    %v1867 = vpop.f32.mrf.mxu0
    %v1868 = vadd.f32 %v382, %v1867
    %v1869 = vpop.f32.mrf.mxu0
    %v1870 = vpop.f32.mrf.mxu0
    %1871 = vdwg.mxu0
    %1872 = vmatprep.subr.bf16.mxu0 %v1250
    %1873 = vmatpush1.bf16.msra.mxu0 %v1249
    %1874 = vmatprep.subr.bf16.mxu0 %v1246
    %1875 = vmatpush1.bf16.msra.mxu0 %v1245
    %1876 = vmatprep.subr.bf16.mxu0 %v1242
    %1877 = vmatpush1.bf16.msra.mxu0 %v1241
    %1878 = vmatprep.subr.bf16.mxu0 %v1238
    %1879 = vmatpush1.bf16.msra.mxu0 %v1237
    %1880 = vmatprep.subr.bf16.mxu0 %v1234
    %1881 = vmatpush1.bf16.msra.mxu0 %v1233
    %1882 = vmatprep.subr.bf16.mxu0 %v1230
    %1883 = vmatpush1.bf16.msra.mxu0 %v1229
    %1884 = vmatprep.subr.bf16.mxu0 %v1226
    %1885 = vmatpush1.bf16.msra.mxu0 %v1225
    %1886 = vmatprep.subr.bf16.mxu0 %v1222
    %1887 = vmatpush1.bf16.msra.mxu0 %v1221
    %1888 = vmatprep.subr.bf16.mxu0 %v1282
    %1889 = vmatpush2.bf16.msra.mxu0 %v1281
    %1890 = vmatprep.subr.bf16.mxu0 %v1278
    %1891 = vmatpush2.bf16.msra.mxu0 %v1277
    %1892 = vmatprep.subr.bf16.mxu0 %v1274
    %1893 = vmatpush2.bf16.msra.mxu0 %v1273
    %1894 = vmatprep.subr.bf16.mxu0 %v1270
    %1895 = vmatpush2.bf16.msra.mxu0 %v1269
    %1896 = vmatprep.subr.bf16.mxu0 %v1266
    %1897 = vmatpush2.bf16.msra.mxu0 %v1265
    %1898 = vmatprep.subr.bf16.mxu0 %v1262
    %1899 = vmatpush2.bf16.msra.mxu0 %v1261
    %1900 = vmatprep.subr.bf16.mxu0 %v1258
    %1901 = vmatpush2.bf16.msra.mxu0 %v1257
    %1902 = vmatprep.subr.bf16.mxu0 %v1254
    %1903 = vmatpush2.bf16.msra.mxu0 %v1253
    %1904 = vmatprep.mubr.bf16.mxu0 %v104
    %1905 = vmatmul.mubr.bf16.gmra.mxu0 %v103
    %v1906 = vpop.f32.mrf.mxu0
    %v1907 = vadd.f32 %v1866, %v1906
    %v1908 = vpop.f32.mrf.mxu0
    %v1909 = vadd.f32 %v1868, %v1908
    %v1910 = vpop.f32.mrf.mxu0
    %v1911 = vpop.f32.mrf.mxu0
    %1912 = vdwg.mxu0
    %1913 = vmatprep.subr.bf16.mxu0 %v1314
    %1914 = vmatpush1.bf16.msra.mxu0 %v1313
    %1915 = vmatprep.subr.bf16.mxu0 %v1310
    %1916 = vmatpush1.bf16.msra.mxu0 %v1309
    %1917 = vmatprep.subr.bf16.mxu0 %v1306
    %1918 = vmatpush1.bf16.msra.mxu0 %v1305
    %1919 = vmatprep.subr.bf16.mxu0 %v1302
    %1920 = vmatpush1.bf16.msra.mxu0 %v1301
    %1921 = vmatprep.subr.bf16.mxu0 %v1298
    %1922 = vmatpush1.bf16.msra.mxu0 %v1297
    %1923 = vmatprep.subr.bf16.mxu0 %v1294
    %1924 = vmatpush1.bf16.msra.mxu0 %v1293
    %1925 = vmatprep.subr.bf16.mxu0 %v1290
    %1926 = vmatpush1.bf16.msra.mxu0 %v1289
    %1927 = vmatprep.subr.bf16.mxu0 %v1286
    %1928 = vmatpush1.bf16.msra.mxu0 %v1285
    %1929 = vmatprep.subr.bf16.mxu0 %v1346
    %1930 = vmatpush2.bf16.msra.mxu0 %v1345
    %1931 = vmatprep.subr.bf16.mxu0 %v1342
    %1932 = vmatpush2.bf16.msra.mxu0 %v1341
    %1933 = vmatprep.subr.bf16.mxu0 %v1338
    %1934 = vmatpush2.bf16.msra.mxu0 %v1337
    %1935 = vmatprep.subr.bf16.mxu0 %v1334
    %1936 = vmatpush2.bf16.msra.mxu0 %v1333
    %1937 = vmatprep.subr.bf16.mxu0 %v1330
    %1938 = vmatpush2.bf16.msra.mxu0 %v1329
    %1939 = vmatprep.subr.bf16.mxu0 %v1326
    %1940 = vmatpush2.bf16.msra.mxu0 %v1325
    %1941 = vmatprep.subr.bf16.mxu0 %v1322
    %1942 = vmatpush2.bf16.msra.mxu0 %v1321
    %1943 = vmatprep.subr.bf16.mxu0 %v1318
    %1944 = vmatpush2.bf16.msra.mxu0 %v1317
    %1945 = vmatprep.mubr.bf16.mxu0 %v106
    %1946 = vmatmul.mubr.bf16.gmra.mxu0 %v105
    %v1947 = vpop.f32.mrf.mxu0
    %v1948 = vadd.f32 %v1907, %v1947
    %v1949 = vpop.f32.mrf.mxu0
    %v1950 = vadd.f32 %v1909, %v1949
    %v1951 = vpop.f32.mrf.mxu0
    %v1952 = vpop.f32.mrf.mxu0
    %1953 = vdwg.mxu0
    %1954 = vmatprep.subr.bf16.mxu0 %v1378
    %1955 = vmatpush1.bf16.msra.mxu0 %v1377
    %1956 = vmatprep.subr.bf16.mxu0 %v1374
    %1957 = vmatpush1.bf16.msra.mxu0 %v1373
    %1958 = vmatprep.subr.bf16.mxu0 %v1370
    %1959 = vmatpush1.bf16.msra.mxu0 %v1369
    %1960 = vmatprep.subr.bf16.mxu0 %v1366
    %1961 = vmatpush1.bf16.msra.mxu0 %v1365
    %1962 = vmatprep.subr.bf16.mxu0 %v1362
    %1963 = vmatpush1.bf16.msra.mxu0 %v1361
    %1964 = vmatprep.subr.bf16.mxu0 %v1358
    %1965 = vmatpush1.bf16.msra.mxu0 %v1357
    %1966 = vmatprep.subr.bf16.mxu0 %v1354
    %1967 = vmatpush1.bf16.msra.mxu0 %v1353
    %1968 = vmatprep.subr.bf16.mxu0 %v1350
    %1969 = vmatpush1.bf16.msra.mxu0 %v1349
    %1970 = vmatprep.subr.bf16.mxu0 %v1410
    %1971 = vmatpush2.bf16.msra.mxu0 %v1409
    %1972 = vmatprep.subr.bf16.mxu0 %v1406
    %1973 = vmatpush2.bf16.msra.mxu0 %v1405
    %1974 = vmatprep.subr.bf16.mxu0 %v1402
    %1975 = vmatpush2.bf16.msra.mxu0 %v1401
    %1976 = vmatprep.subr.bf16.mxu0 %v1398
    %1977 = vmatpush2.bf16.msra.mxu0 %v1397
    %1978 = vmatprep.subr.bf16.mxu0 %v1394
    %1979 = vmatpush2.bf16.msra.mxu0 %v1393
    %1980 = vmatprep.subr.bf16.mxu0 %v1390
    %1981 = vmatpush2.bf16.msra.mxu0 %v1389
    %1982 = vmatprep.subr.bf16.mxu0 %v1386
    %1983 = vmatpush2.bf16.msra.mxu0 %v1385
    %1984 = vmatprep.subr.bf16.mxu0 %v1382
    %1985 = vmatpush2.bf16.msra.mxu0 %v1381
    %1986 = vmatprep.mubr.bf16.mxu0 %v108
    %1987 = vmatmul.mubr.bf16.gmra.mxu0 %v107
    %v1988 = vpop.f32.mrf.mxu0
    %v1989 = vadd.f32 %v1948, %v1988
    %v1990 = vpop.f32.mrf.mxu0
    %v1991 = vadd.f32 %v1950, %v1990
    %v1992 = vpop.f32.mrf.mxu0
    %v1993 = vpop.f32.mrf.mxu0
    %1994 = vdwg.mxu0
    %v1995 = vmul.f32 %v1825, 0.2
    %v1996 = vmul.f32 %v1827, 0.2
    %v1997 = vmul.f32 %v1989, 0.2
    %v1998 = vmul.f32 %v1991, 0.2
    %v1999 = vmax.f32 %v1825, %v1995
    %v2000 = vmax.f32 %v1827, %v1996
    %v2001 = vmax.f32 %v1989, %v1997
    %v2002 = vmax.f32 %v1991, %v1998
    %v2003 = vpack.c.bf16 %v1999, %v1999
    %v2004 = vpack.c.bf16 %v2000, %v2000
    %v2005 = vpack.c.bf16 %v2001, %v2001
    %v2006 = vpack.c.bf16 %v2002, %v2002
    %v2007 = vld [vmem:[#allocation4] sm:$0xff]
    %v2008 = vld [vmem:[#allocation4 + $0x8] sm:$0xff]
    %v2009 = vld [vmem:[#allocation4 + $0x10] sm:$0xff]
    %v2010 = vld [vmem:[#allocation4 + $0x18] sm:$0xff]
    %v2011 = vld [vmem:[#allocation4 + $0x20] sm:$0xff]
    %v2012 = vld [vmem:[#allocation4 + $0x28] sm:$0xff]
    %v2013 = vld [vmem:[#allocation4 + $0x30] sm:$0xff]
    %v2014 = vld [vmem:[#allocation4 + $0x38] sm:$0xff]
    %v2015 = vld [vmem:[#allocation4 + $0x40] sm:$0xff]
    %v2016 = vld [vmem:[#allocation4 + $0x48] sm:$0xff]
    %v2017 = vld [vmem:[#allocation4 + $0x50] sm:$0xff]
    %v2018 = vld [vmem:[#allocation4 + $0x58] sm:$0xff]
    %v2019 = vld [vmem:[#allocation4 + $0x60] sm:$0xff]
    %v2020 = vld [vmem:[#allocation4 + $0x68] sm:$0xff]
    %v2021 = vld [vmem:[#allocation4 + $0x70] sm:$0xff]
    %v2022 = vld [vmem:[#allocation4 + $0x78] sm:$0xff]
    %v2023 = vld [vmem:[#allocation4 + $0x80] sm:$0xff]
    %v2024 = vld [vmem:[#allocation4 + $0x88] sm:$0xff]
    %v2025 = vld [vmem:[#allocation4 + $0x90] sm:$0xff]
    %v2026 = vld [vmem:[#allocation4 + $0x98] sm:$0xff]
    %v2027 = vld [vmem:[#allocation4 + $0xa0] sm:$0xff]
    %v2028 = vld [vmem:[#allocation4 + $0xa8] sm:$0xff]
    %v2029 = vld [vmem:[#allocation4 + $0xb0] sm:$0xff]
    %v2030 = vld [vmem:[#allocation4 + $0xb8] sm:$0xff]
    %v2031 = vld [vmem:[#allocation4 + $0xc0] sm:$0xff]
    %v2032 = vld [vmem:[#allocation4 + $0xc8] sm:$0xff]
    %v2033 = vld [vmem:[#allocation4 + $0xd0] sm:$0xff]
    %v2034 = vld [vmem:[#allocation4 + $0xd8] sm:$0xff]
    %v2035 = vld [vmem:[#allocation4 + $0xe0] sm:$0xff]
    %v2036 = vld [vmem:[#allocation4 + $0xe8] sm:$0xff]
    %v2037 = vld [vmem:[#allocation4 + $0xf0] sm:$0xff]
    %v2038 = vld [vmem:[#allocation4 + $0xf8] sm:$0xff]
    %v2039 = vld [vmem:[#allocation4 + $0x100] sm:$0xff]
    %v2040 = vld [vmem:[#allocation4 + $0x108] sm:$0xff]
    %v2041 = vld [vmem:[#allocation4 + $0x110] sm:$0xff]
    %v2042 = vld [vmem:[#allocation4 + $0x118] sm:$0xff]
    %v2043 = vld [vmem:[#allocation4 + $0x120] sm:$0xff]
    %v2044 = vld [vmem:[#allocation4 + $0x128] sm:$0xff]
    %v2045 = vld [vmem:[#allocation4 + $0x130] sm:$0xff]
    %v2046 = vld [vmem:[#allocation4 + $0x138] sm:$0xff]
    %v2047 = vld [vmem:[#allocation4 + $0x140] sm:$0xff]
    %v2048 = vld [vmem:[#allocation4 + $0x148] sm:$0xff]
    %v2049 = vld [vmem:[#allocation4 + $0x150] sm:$0xff]
    %v2050 = vld [vmem:[#allocation4 + $0x158] sm:$0xff]
    %v2051 = vld [vmem:[#allocation4 + $0x160] sm:$0xff]
    %v2052 = vld [vmem:[#allocation4 + $0x168] sm:$0xff]
    %v2053 = vld [vmem:[#allocation4 + $0x170] sm:$0xff]
    %v2054 = vld [vmem:[#allocation4 + $0x178] sm:$0xff]
    %v2055 = vld [vmem:[#allocation4 + $0x180] sm:$0xff]
    %v2056 = vld [vmem:[#allocation4 + $0x188] sm:$0xff]
    %v2057 = vld [vmem:[#allocation4 + $0x190] sm:$0xff]
    %v2058 = vld [vmem:[#allocation4 + $0x198] sm:$0xff]
    %v2059 = vld [vmem:[#allocation4 + $0x1a0] sm:$0xff]
    %v2060 = vld [vmem:[#allocation4 + $0x1a8] sm:$0xff]
    %v2061 = vld [vmem:[#allocation4 + $0x1b0] sm:$0xff]
    %v2062 = vld [vmem:[#allocation4 + $0x1b8] sm:$0xff]
    %v2063 = vld [vmem:[#allocation4 + $0x1c0] sm:$0xff]
    %v2064 = vld [vmem:[#allocation4 + $0x1c8] sm:$0xff]
    %v2065 = vld [vmem:[#allocation4 + $0x1d0] sm:$0xff]
    %v2066 = vld [vmem:[#allocation4 + $0x1d8] sm:$0xff]
    %v2067 = vld [vmem:[#allocation4 + $0x1e0] sm:$0xff]
    %v2068 = vld [vmem:[#allocation4 + $0x1e8] sm:$0xff]
    %v2069 = vld [vmem:[#allocation4 + $0x1f0] sm:$0xff]
    %v2070 = vld [vmem:[#allocation4 + $0x1f8] sm:$0xff]
    %v2071 = vld [vmem:[%s4] sm:$0x3]
    %v2073 = vlaneseq
    %v2074 = vshrl.u32 %v2073, 7
    %v2075 = vsub.s32 0, %v2074
    %v2076 = vrot.slane %v2071, %v2075
    %v2077 = vlaneseq
    %v2078 = vshrl.u32 %v2077, 7
    %v2079 = vsub.s32 1, %v2078
    %v2080 = vrot.slane %v2071, %v2079
    %v2147 = vunpack.c.l.b16 %v2007
    %v2148 = vunpack.c.h.b16 %v2007
    %v2149 = vunpack.c.l.b16 %v2008
    %v2150 = vunpack.c.h.b16 %v2008
    %v2151 = vunpack.c.l.b16 %v2009
    %v2152 = vunpack.c.h.b16 %v2009
    %v2153 = vunpack.c.l.b16 %v2010
    %v2154 = vunpack.c.h.b16 %v2010
    %v2155 = vunpack.c.l.b16 %v2011
    %v2156 = vunpack.c.h.b16 %v2011
    %v2157 = vunpack.c.l.b16 %v2012
    %v2158 = vunpack.c.h.b16 %v2012
    %v2159 = vunpack.c.l.b16 %v2013
    %v2160 = vunpack.c.h.b16 %v2013
    %v2161 = vunpack.c.l.b16 %v2014
    %v2162 = vunpack.c.h.b16 %v2014
    %v2163 = vunpack.c.l.b16 %v2015
    %v2164 = vunpack.c.h.b16 %v2015
    %v2165 = vunpack.c.l.b16 %v2016
    %v2166 = vunpack.c.h.b16 %v2016
    %v2167 = vunpack.c.l.b16 %v2017
    %v2168 = vunpack.c.h.b16 %v2017
    %v2169 = vunpack.c.l.b16 %v2018
    %v2170 = vunpack.c.h.b16 %v2018
    %v2171 = vunpack.c.l.b16 %v2019
    %v2172 = vunpack.c.h.b16 %v2019
    %v2173 = vunpack.c.l.b16 %v2020
    %v2174 = vunpack.c.h.b16 %v2020
    %v2175 = vunpack.c.l.b16 %v2021
    %v2176 = vunpack.c.h.b16 %v2021
    %v2177 = vunpack.c.l.b16 %v2022
    %v2178 = vunpack.c.h.b16 %v2022
    %v2179 = vunpack.c.l.b16 %v2023
    %v2180 = vunpack.c.h.b16 %v2023
    %v2181 = vunpack.c.l.b16 %v2024
    %v2182 = vunpack.c.h.b16 %v2024
    %v2183 = vunpack.c.l.b16 %v2025
    %v2184 = vunpack.c.h.b16 %v2025
    %v2185 = vunpack.c.l.b16 %v2026
    %v2186 = vunpack.c.h.b16 %v2026
    %v2187 = vunpack.c.l.b16 %v2027
    %v2188 = vunpack.c.h.b16 %v2027
    %v2189 = vunpack.c.l.b16 %v2028
    %v2190 = vunpack.c.h.b16 %v2028
    %v2191 = vunpack.c.l.b16 %v2029
    %v2192 = vunpack.c.h.b16 %v2029
    %v2193 = vunpack.c.l.b16 %v2030
    %v2194 = vunpack.c.h.b16 %v2030
    %v2195 = vunpack.c.l.b16 %v2031
    %v2196 = vunpack.c.h.b16 %v2031
    %v2197 = vunpack.c.l.b16 %v2032
    %v2198 = vunpack.c.h.b16 %v2032
    %v2199 = vunpack.c.l.b16 %v2033
    %v2200 = vunpack.c.h.b16 %v2033
    %v2201 = vunpack.c.l.b16 %v2034
    %v2202 = vunpack.c.h.b16 %v2034
    %v2203 = vunpack.c.l.b16 %v2035
    %v2204 = vunpack.c.h.b16 %v2035
    %v2205 = vunpack.c.l.b16 %v2036
    %v2206 = vunpack.c.h.b16 %v2036
    %v2207 = vunpack.c.l.b16 %v2037
    %v2208 = vunpack.c.h.b16 %v2037
    %v2209 = vunpack.c.l.b16 %v2038
    %v2210 = vunpack.c.h.b16 %v2038
    %v2211 = vunpack.c.l.b16 %v2039
    %v2212 = vunpack.c.h.b16 %v2039
    %v2213 = vunpack.c.l.b16 %v2040
    %v2214 = vunpack.c.h.b16 %v2040
    %v2215 = vunpack.c.l.b16 %v2041
    %v2216 = vunpack.c.h.b16 %v2041
    %v2217 = vunpack.c.l.b16 %v2042
    %v2218 = vunpack.c.h.b16 %v2042
    %v2219 = vunpack.c.l.b16 %v2043
    %v2220 = vunpack.c.h.b16 %v2043
    %v2221 = vunpack.c.l.b16 %v2044
    %v2222 = vunpack.c.h.b16 %v2044
    %v2223 = vunpack.c.l.b16 %v2045
    %v2224 = vunpack.c.h.b16 %v2045
    %v2225 = vunpack.c.l.b16 %v2046
    %v2226 = vunpack.c.h.b16 %v2046
    %v2227 = vunpack.c.l.b16 %v2047
    %v2228 = vunpack.c.h.b16 %v2047
    %v2229 = vunpack.c.l.b16 %v2048
    %v2230 = vunpack.c.h.b16 %v2048
    %v2231 = vunpack.c.l.b16 %v2049
    %v2232 = vunpack.c.h.b16 %v2049
    %v2233 = vunpack.c.l.b16 %v2050
    %v2234 = vunpack.c.h.b16 %v2050
    %v2235 = vunpack.c.l.b16 %v2051
    %v2236 = vunpack.c.h.b16 %v2051
    %v2237 = vunpack.c.l.b16 %v2052
    %v2238 = vunpack.c.h.b16 %v2052
    %v2239 = vunpack.c.l.b16 %v2053
    %v2240 = vunpack.c.h.b16 %v2053
    %v2241 = vunpack.c.l.b16 %v2054
    %v2242 = vunpack.c.h.b16 %v2054
    %v2243 = vunpack.c.l.b16 %v2055
    %v2244 = vunpack.c.h.b16 %v2055
    %v2245 = vunpack.c.l.b16 %v2056
    %v2246 = vunpack.c.h.b16 %v2056
    %v2247 = vunpack.c.l.b16 %v2057
    %v2248 = vunpack.c.h.b16 %v2057
    %v2249 = vunpack.c.l.b16 %v2058
    %v2250 = vunpack.c.h.b16 %v2058
    %v2251 = vunpack.c.l.b16 %v2059
    %v2252 = vunpack.c.h.b16 %v2059
    %v2253 = vunpack.c.l.b16 %v2060
    %v2254 = vunpack.c.h.b16 %v2060
    %v2255 = vunpack.c.l.b16 %v2061
    %v2256 = vunpack.c.h.b16 %v2061
    %v2257 = vunpack.c.l.b16 %v2062
    %v2258 = vunpack.c.h.b16 %v2062
    %v2259 = vunpack.c.l.b16 %v2063
    %v2260 = vunpack.c.h.b16 %v2063
    %v2261 = vunpack.c.l.b16 %v2064
    %v2262 = vunpack.c.h.b16 %v2064
    %v2263 = vunpack.c.l.b16 %v2065
    %v2264 = vunpack.c.h.b16 %v2065
    %v2265 = vunpack.c.l.b16 %v2066
    %v2266 = vunpack.c.h.b16 %v2066
    %v2267 = vunpack.c.l.b16 %v2067
    %v2268 = vunpack.c.h.b16 %v2067
    %v2269 = vunpack.c.l.b16 %v2068
    %v2270 = vunpack.c.h.b16 %v2068
    %v2271 = vunpack.c.l.b16 %v2069
    %v2272 = vunpack.c.h.b16 %v2069
    %v2273 = vunpack.c.l.b16 %v2070
    %v2274 = vunpack.c.h.b16 %v2070
    %v2275 = vpack.c.b16 %v2149, %v2147
    %v2276 = vpack.c.b16 %v2150, %v2148
    %v2277 = vpack.c.b16 %v2153, %v2151
    %v2278 = vpack.c.b16 %v2154, %v2152
    %v2279 = vpack.c.b16 %v2157, %v2155
    %v2280 = vpack.c.b16 %v2158, %v2156
    %v2281 = vpack.c.b16 %v2161, %v2159
    %v2282 = vpack.c.b16 %v2162, %v2160
    %v2283 = vpack.c.b16 %v2165, %v2163
    %v2284 = vpack.c.b16 %v2166, %v2164
    %v2285 = vpack.c.b16 %v2169, %v2167
    %v2286 = vpack.c.b16 %v2170, %v2168
    %v2287 = vpack.c.b16 %v2173, %v2171
    %v2288 = vpack.c.b16 %v2174, %v2172
    %v2289 = vpack.c.b16 %v2177, %v2175
    %v2290 = vpack.c.b16 %v2178, %v2176
    %v2291 = vpack.c.b16 %v2181, %v2179
    %v2292 = vpack.c.b16 %v2182, %v2180
    %v2293 = vpack.c.b16 %v2185, %v2183
    %v2294 = vpack.c.b16 %v2186, %v2184
    %v2295 = vpack.c.b16 %v2189, %v2187
    %v2296 = vpack.c.b16 %v2190, %v2188
    %v2297 = vpack.c.b16 %v2193, %v2191
    %v2298 = vpack.c.b16 %v2194, %v2192
    %v2299 = vpack.c.b16 %v2197, %v2195
    %v2300 = vpack.c.b16 %v2198, %v2196
    %v2301 = vpack.c.b16 %v2201, %v2199
    %v2302 = vpack.c.b16 %v2202, %v2200
    %v2303 = vpack.c.b16 %v2205, %v2203
    %v2304 = vpack.c.b16 %v2206, %v2204
    %v2305 = vpack.c.b16 %v2209, %v2207
    %v2306 = vpack.c.b16 %v2210, %v2208
    %v2307 = vpack.c.b16 %v2213, %v2211
    %v2308 = vpack.c.b16 %v2214, %v2212
    %v2309 = vpack.c.b16 %v2217, %v2215
    %v2310 = vpack.c.b16 %v2218, %v2216
    %v2311 = vpack.c.b16 %v2221, %v2219
    %v2312 = vpack.c.b16 %v2222, %v2220
    %v2313 = vpack.c.b16 %v2225, %v2223
    %v2314 = vpack.c.b16 %v2226, %v2224
    %v2315 = vpack.c.b16 %v2229, %v2227
    %v2316 = vpack.c.b16 %v2230, %v2228
    %v2317 = vpack.c.b16 %v2233, %v2231
    %v2318 = vpack.c.b16 %v2234, %v2232
    %v2319 = vpack.c.b16 %v2237, %v2235
    %v2320 = vpack.c.b16 %v2238, %v2236
    %v2321 = vpack.c.b16 %v2241, %v2239
    %v2322 = vpack.c.b16 %v2242, %v2240
    %v2323 = vpack.c.b16 %v2245, %v2243
    %v2324 = vpack.c.b16 %v2246, %v2244
    %v2325 = vpack.c.b16 %v2249, %v2247
    %v2326 = vpack.c.b16 %v2250, %v2248
    %v2327 = vpack.c.b16 %v2253, %v2251
    %v2328 = vpack.c.b16 %v2254, %v2252
    %v2329 = vpack.c.b16 %v2257, %v2255
    %v2330 = vpack.c.b16 %v2258, %v2256
    %v2331 = vpack.c.b16 %v2261, %v2259
    %v2332 = vpack.c.b16 %v2262, %v2260
    %v2333 = vpack.c.b16 %v2265, %v2263
    %v2334 = vpack.c.b16 %v2266, %v2264
    %v2335 = vpack.c.b16 %v2269, %v2267
    %v2336 = vpack.c.b16 %v2270, %v2268
    %v2337 = vpack.c.b16 %v2273, %v2271
    %v2338 = vpack.c.b16 %v2274, %v2272
    %2403 = vmatprep.subr.bf16.mxu0 %v2290
    %2404 = vmatpush1.bf16.msra.mxu0 %v2289
    %2405 = vmatprep.subr.bf16.mxu0 %v2288
    %2406 = vmatpush1.bf16.msra.mxu0 %v2287
    %2407 = vmatprep.subr.bf16.mxu0 %v2286
    %2408 = vmatpush1.bf16.msra.mxu0 %v2285
    %2409 = vmatprep.subr.bf16.mxu0 %v2284
    %2410 = vmatpush1.bf16.msra.mxu0 %v2283
    %2411 = vmatprep.subr.bf16.mxu0 %v2282
    %2412 = vmatpush1.bf16.msra.mxu0 %v2281
    %2413 = vmatprep.subr.bf16.mxu0 %v2280
    %2414 = vmatpush1.bf16.msra.mxu0 %v2279
    %2415 = vmatprep.subr.bf16.mxu0 %v2278
    %2416 = vmatpush1.bf16.msra.mxu0 %v2277
    %2417 = vmatprep.subr.bf16.mxu0 %v2276
    %2418 = vmatpush1.bf16.msra.mxu0 %v2275
    %2419 = vmatprep.subr.bf16.mxu0 %v2306
    %2420 = vmatpush2.bf16.msra.mxu0 %v2305
    %2421 = vmatprep.subr.bf16.mxu0 %v2304
    %2422 = vmatpush2.bf16.msra.mxu0 %v2303
    %2423 = vmatprep.subr.bf16.mxu0 %v2302
    %2424 = vmatpush2.bf16.msra.mxu0 %v2301
    %2425 = vmatprep.subr.bf16.mxu0 %v2300
    %2426 = vmatpush2.bf16.msra.mxu0 %v2299
    %2427 = vmatprep.subr.bf16.mxu0 %v2298
    %2428 = vmatpush2.bf16.msra.mxu0 %v2297
    %2429 = vmatprep.subr.bf16.mxu0 %v2296
    %2430 = vmatpush2.bf16.msra.mxu0 %v2295
    %2431 = vmatprep.subr.bf16.mxu0 %v2294
    %2432 = vmatpush2.bf16.msra.mxu0 %v2293
    %2433 = vmatprep.subr.bf16.mxu0 %v2292
    %2434 = vmatpush2.bf16.msra.mxu0 %v2291
    %2435 = vmatprep.mubr.bf16.mxu0 %v2004
    %2436 = vmatmul.mubr.bf16.gmra.mxu0 %v2003
    %v2437 = vpop.f32.mrf.mxu0
    %v2438 = vadd.f32 %v2076, %v2437
    %v2439 = vpop.f32.mrf.mxu0
    %v2440 = vadd.f32 %v2080, %v2439
    %v2441 = vpop.f32.mrf.mxu0
    %v2442 = vpop.f32.mrf.mxu0
    %2443 = vdwg.mxu0
    %2444 = vmatprep.subr.bf16.mxu0 %v2322
    %2445 = vmatpush1.bf16.msra.mxu0 %v2321
    %2446 = vmatprep.subr.bf16.mxu0 %v2320
    %2447 = vmatpush1.bf16.msra.mxu0 %v2319
    %2448 = vmatprep.subr.bf16.mxu0 %v2318
    %2449 = vmatpush1.bf16.msra.mxu0 %v2317
    %2450 = vmatprep.subr.bf16.mxu0 %v2316
    %2451 = vmatpush1.bf16.msra.mxu0 %v2315
    %2452 = vmatprep.subr.bf16.mxu0 %v2314
    %2453 = vmatpush1.bf16.msra.mxu0 %v2313
    %2454 = vmatprep.subr.bf16.mxu0 %v2312
    %2455 = vmatpush1.bf16.msra.mxu0 %v2311
    %2456 = vmatprep.subr.bf16.mxu0 %v2310
    %2457 = vmatpush1.bf16.msra.mxu0 %v2309
    %2458 = vmatprep.subr.bf16.mxu0 %v2308
    %2459 = vmatpush1.bf16.msra.mxu0 %v2307
    %2460 = vmatprep.subr.bf16.mxu0 %v2338
    %2461 = vmatpush2.bf16.msra.mxu0 %v2337
    %2462 = vmatprep.subr.bf16.mxu0 %v2336
    %2463 = vmatpush2.bf16.msra.mxu0 %v2335
    %2464 = vmatprep.subr.bf16.mxu0 %v2334
    %2465 = vmatpush2.bf16.msra.mxu0 %v2333
    %2466 = vmatprep.subr.bf16.mxu0 %v2332
    %2467 = vmatpush2.bf16.msra.mxu0 %v2331
    %2468 = vmatprep.subr.bf16.mxu0 %v2330
    %2469 = vmatpush2.bf16.msra.mxu0 %v2329
    %2470 = vmatprep.subr.bf16.mxu0 %v2328
    %2471 = vmatpush2.bf16.msra.mxu0 %v2327
    %2472 = vmatprep.subr.bf16.mxu0 %v2326
    %2473 = vmatpush2.bf16.msra.mxu0 %v2325
    %2474 = vmatprep.subr.bf16.mxu0 %v2324
    %2475 = vmatpush2.bf16.msra.mxu0 %v2323
    %2476 = vmatprep.mubr.bf16.mxu0 %v2006
    %2477 = vmatmul.mubr.bf16.gmra.mxu0 %v2005
    %v2478 = vpop.f32.mrf.mxu0
    %v2479 = vadd.f32 %v2438, %v2478
    %v2480 = vpop.f32.mrf.mxu0
    %v2481 = vadd.f32 %v2440, %v2480
    %v2482 = vpop.f32.mrf.mxu0
    %v2483 = vpop.f32.mrf.mxu0
    %2484 = vdwg.mxu0
    %v2485 = vmul.f32 %v2479, 0.2
    %v2486 = vmul.f32 %v2481, 0.2
    %v2487 = vmax.f32 %v2479, %v2485
    %v2488 = vmax.f32 %v2481, %v2486
    %v2489 = vpack.c.bf16 %v2487, %v2487
    %v2490 = vpack.c.bf16 %v2488, %v2488
    %v2491 = vld [vmem:[%s5] sm:$0xf]
    %v2492 = vld [vmem:[%s5 + $0x4] sm:$0xf]
    %v2493 = vld [vmem:[%s5 + $0x8] sm:$0xf]
    %v2494 = vld [vmem:[%s5 + $0xc] sm:$0xf]
    %v2495 = vld [vmem:[%s5 + $0x10] sm:$0xf]
    %v2496 = vld [vmem:[%s5 + $0x14] sm:$0xf]
    %v2497 = vld [vmem:[%s5 + $0x18] sm:$0xf]
    %v2498 = vld [vmem:[%s5 + $0x1c] sm:$0xf]
    %v2499 = vld [vmem:[%s5 + $0x20] sm:$0xf]
    %v2500 = vld [vmem:[%s5 + $0x24] sm:$0xf]
    %v2501 = vld [vmem:[%s5 + $0x28] sm:$0xf]
    %v2502 = vld [vmem:[%s5 + $0x2c] sm:$0xf]
    %v2503 = vld [vmem:[%s5 + $0x30] sm:$0xf]
    %v2504 = vld [vmem:[%s5 + $0x34] sm:$0xf]
    %v2505 = vld [vmem:[%s5 + $0x38] sm:$0xf]
    %v2506 = vld [vmem:[%s5 + $0x3c] sm:$0xf]
    %v2507 = vld [vmem:[%s5 + $0x40] sm:$0xf]
    %v2508 = vld [vmem:[%s5 + $0x44] sm:$0xf]
    %v2509 = vld [vmem:[%s5 + $0x48] sm:$0xf]
    %v2510 = vld [vmem:[%s5 + $0x4c] sm:$0xf]
    %v2511 = vld [vmem:[%s5 + $0x50] sm:$0xf]
    %v2512 = vld [vmem:[%s5 + $0x54] sm:$0xf]
    %v2513 = vld [vmem:[%s5 + $0x58] sm:$0xf]
    %v2514 = vld [vmem:[%s5 + $0x5c] sm:$0xf]
    %v2515 = vld [vmem:[%s5 + $0x60] sm:$0xf]
    %v2516 = vld [vmem:[%s5 + $0x64] sm:$0xf]
    %v2517 = vld [vmem:[%s5 + $0x68] sm:$0xf]
    %v2518 = vld [vmem:[%s5 + $0x6c] sm:$0xf]
    %v2519 = vld [vmem:[%s5 + $0x70] sm:$0xf]
    %v2520 = vld [vmem:[%s5 + $0x74] sm:$0xf]
    %v2521 = vld [vmem:[%s5 + $0x78] sm:$0xf]
    %v2522 = vld [vmem:[%s5 + $0x7c] sm:$0xf]
    %v2523 = vld [vmem:[%s6] sm:$0x1]
    %v2525 = vlaneseq
    %v2526 = vshrl.u32 %v2525, 7
    %v2527 = vsub.s32 0, %v2526
    %v2528 = vrot.slane %v2523, %v2527
    %v2562 = vunpack.c.l.b16 %v2491
    %v2563 = vunpack.c.l.b16 %v2492
    %v2564 = vunpack.c.l.b16 %v2493
    %v2565 = vunpack.c.l.b16 %v2494
    %v2566 = vunpack.c.l.b16 %v2495
    %v2567 = vunpack.c.l.b16 %v2496
    %v2568 = vunpack.c.l.b16 %v2497
    %v2569 = vunpack.c.l.b16 %v2498
    %v2570 = vunpack.c.l.b16 %v2499
    %v2571 = vunpack.c.l.b16 %v2500
    %v2572 = vunpack.c.l.b16 %v2501
    %v2573 = vunpack.c.l.b16 %v2502
    %v2574 = vunpack.c.l.b16 %v2503
    %v2575 = vunpack.c.l.b16 %v2504
    %v2576 = vunpack.c.l.b16 %v2505
    %v2577 = vunpack.c.l.b16 %v2506
    %v2578 = vunpack.c.l.b16 %v2507
    %v2579 = vunpack.c.l.b16 %v2508
    %v2580 = vunpack.c.l.b16 %v2509
    %v2581 = vunpack.c.l.b16 %v2510
    %v2582 = vunpack.c.l.b16 %v2511
    %v2583 = vunpack.c.l.b16 %v2512
    %v2584 = vunpack.c.l.b16 %v2513
    %v2585 = vunpack.c.l.b16 %v2514
    %v2586 = vunpack.c.l.b16 %v2515
    %v2587 = vunpack.c.l.b16 %v2516
    %v2588 = vunpack.c.l.b16 %v2517
    %v2589 = vunpack.c.l.b16 %v2518
    %v2590 = vunpack.c.l.b16 %v2519
    %v2591 = vunpack.c.l.b16 %v2520
    %v2592 = vunpack.c.l.b16 %v2521
    %v2593 = vunpack.c.l.b16 %v2522
    %v2594 = vpack.c.b16 %v2563, %v2562
    %v2595 = vpack.c.b16 %v2565, %v2564
    %v2596 = vpack.c.b16 %v2567, %v2566
    %v2597 = vpack.c.b16 %v2569, %v2568
    %v2598 = vpack.c.b16 %v2571, %v2570
    %v2599 = vpack.c.b16 %v2573, %v2572
    %v2600 = vpack.c.b16 %v2575, %v2574
    %v2601 = vpack.c.b16 %v2577, %v2576
    %v2602 = vpack.c.b16 %v2579, %v2578
    %v2603 = vpack.c.b16 %v2581, %v2580
    %v2604 = vpack.c.b16 %v2583, %v2582
    %v2605 = vpack.c.b16 %v2585, %v2584
    %v2606 = vpack.c.b16 %v2587, %v2586
    %v2607 = vpack.c.b16 %v2589, %v2588
    %v2608 = vpack.c.b16 %v2591, %v2590
    %v2609 = vpack.c.b16 %v2593, %v2592
    %2626 = vmatprep.subr.bf16.mxu0 0
    %2627 = vmatpush1.bf16.msra.mxu0 %v2601
    %2628 = vmatprep.subr.bf16.mxu0 0
    %2629 = vmatpush1.bf16.msra.mxu0 %v2600
    %2630 = vmatprep.subr.bf16.mxu0 0
    %2631 = vmatpush1.bf16.msra.mxu0 %v2599
    %2632 = vmatprep.subr.bf16.mxu0 0
    %2633 = vmatpush1.bf16.msra.mxu0 %v2598
    %2634 = vmatprep.subr.bf16.mxu0 0
    %2635 = vmatpush1.bf16.msra.mxu0 %v2597
    %2636 = vmatprep.subr.bf16.mxu0 0
    %2637 = vmatpush1.bf16.msra.mxu0 %v2596
    %2638 = vmatprep.subr.bf16.mxu0 0
    %2639 = vmatpush1.bf16.msra.mxu0 %v2595
    %2640 = vmatprep.subr.bf16.mxu0 0
    %2641 = vmatpush1.bf16.msra.mxu0 %v2594
    %2642 = vmatprep.subr.bf16.mxu0 0
    %2643 = vmatpush2.bf16.msra.mxu0 %v2609
    %2644 = vmatprep.subr.bf16.mxu0 0
    %2645 = vmatpush2.bf16.msra.mxu0 %v2608
    %2646 = vmatprep.subr.bf16.mxu0 0
    %2647 = vmatpush2.bf16.msra.mxu0 %v2607
    %2648 = vmatprep.subr.bf16.mxu0 0
    %2649 = vmatpush2.bf16.msra.mxu0 %v2606
    %2650 = vmatprep.subr.bf16.mxu0 0
    %2651 = vmatpush2.bf16.msra.mxu0 %v2605
    %2652 = vmatprep.subr.bf16.mxu0 0
    %2653 = vmatpush2.bf16.msra.mxu0 %v2604
    %2654 = vmatprep.subr.bf16.mxu0 0
    %2655 = vmatpush2.bf16.msra.mxu0 %v2603
    %2656 = vmatprep.subr.bf16.mxu0 0
    %2657 = vmatpush2.bf16.msra.mxu0 %v2602
    %2658 = vmatprep.mubr.bf16.mxu0 %v2490
    %2659 = vmatmul.mubr.bf16.gmra.mxu0 %v2489
    %v2660 = vpop.f32.mrf.mxu0
    %v2661 = vadd.f32 %v2528, %v2660
    %v2662 = vpop.f32.mrf.mxu0
    %v2663 = vpop.f32.mrf.mxu0
    %v2664 = vpop.f32.mrf.mxu0
    %2665 = vdwg.mxu0
    %v2666 = vsub.f32 0.0, %v2661
    %v2667 = vmul.f32 %v2666, 1.442695
    %v2668 = vpow.pop %v2667
    %v2669 = vadd.f32 %v2668, 1.0
    %v2670 = vrcp.pop %v2669
    %v2671 = vpack.c.bf16 %v2670, %v2670
    %2672 = vst [vmem:[%s7] sm:$0x1] %v2671
    // Predicated region
    $region38: #{discriminator_forward.1} parent=1 // pred_check
      _
    $region39: #{discriminator_forward.1} parent=1 // pred_check_branch
      %2674 = sbr.rel (0) target = $region41
    $region40: #{discriminator_forward.1} parent=1 // pred_region
      _
    $region41: #{discriminator_forward.1} parent=1 // pred_fallthru
      _
    // Predicated region
    $region42: #{discriminator_forward.1} parent=1 // pred_check
      _
    $region43: #{discriminator_forward.1} parent=1 // pred_check_branch
      %2676 = sbr.rel (0) target = $region45
    $region44: #{discriminator_forward.1} parent=1 // pred_region
      _
    $region45: #{discriminator_forward.1} parent=1 // pred_fallthru
      _
    %2677 = vsyncpa [#allocation3], 1
    %2678 = vsyncpa [#allocation5], 1

</llo_original>
